<compile_context>
chip_gen: v6e
topology: v6e:2x2x1
jax: 0.10.0
libtpu: 0.0.40
codegen_flags: <defaults>
</compile_context>

<pallas_src>
import functools

import jax
import jax.numpy as jnp
from jax.experimental import pallas as pl
from jax.experimental.pallas import tpu as pltpu


def self_attention_kernel(x_ref, wqkv_ref, bqkv_ref, o_ref, *,
                          matmul_dtype, approx_recip):
    Bt, S, H = x_ref.shape

    # One fused projection matmul over all Bt*S rows: (Bt*S, H) @ (H, 3H).
    x = x_ref[...].reshape(Bt * S, H).astype(matmul_dtype)
    qkv = jnp.dot(x, wqkv_ref[...], preferred_element_type=jnp.float32)
    qkv = qkv + bqkv_ref[...].astype(jnp.float32)            # broadcast (1, 3H)
    qkv = qkv.reshape(Bt, S, 3 * H)

    q = qkv[:, :, 0 * H:1 * H].astype(matmul_dtype)
    k = qkv[:, :, 1 * H:2 * H].astype(matmul_dtype)
    v = qkv[:, :, 2 * H:3 * H].astype(matmul_dtype)

    # attention_scores = q @ k^T, batched; contraction on the last dims feeds
    # the MXU directly (no explicit transpose of k).
    # NOTE: deliberately NO 1/sqrt(d_k) scaling -- matches the PyTorch module.
    scores = jnp.einsum("bqd,bkd->bqk", q, k,
                        preferred_element_type=jnp.float32)       # (Bt, S, S)

    # Numerically stable softmax numerator.
    m = jnp.max(scores, axis=-1, keepdims=True)
    p = jnp.exp(scores - m)                                       # unnormalized
    row_sum = jnp.sum(p, axis=-1, keepdims=True)                  # (Bt, S, 1)

    # Softmax normalization (1/row_sum) and the mean over the query dim (1/S)
    # folded into a single per-query weight, applied as an MXU matvec:
    #   out[b, h] = sum_q w[b, q] * sum_k p[b, q, k] * v[b, k, h]
    # with w[b, q] = 1 / (S * row_sum[b, q]).
    if approx_recip:
        w = pl.reciprocal(jnp.float32(S) * row_sum, approx=True)  # EUP slot
    else:
        w = 1.0 / (jnp.float32(S) * row_sum)                      # exact path
    # (Bt,S,1) contracted with (Bt,S,S) over q -> (Bt,1,S)
    p_mean = jnp.einsum("bqx,bqk->bxk",
                        w.astype(matmul_dtype), p.astype(matmul_dtype),
                        preferred_element_type=jnp.float32)
    # mean_q(P @ V) == (mean_q P) @ V : (Bt,1,S) @ (Bt,S,H) -> (Bt,1,H)
    ctx = jnp.einsum("bxk,bkh->bxh", p_mean.astype(matmul_dtype), v,
                     preferred_element_type=jnp.float32)

    o_ref[...] = ctx[:, 0, :].astype(o_ref.dtype)


def fuse_qkv_params(wq, bq, wk, bk, wv, bv, *, matmul_dtype=jnp.float32):
    """Fuse the three Linear layers ONCE at model init (not per forward).

    torch stores Linear weights as (out, in); transpose to (in, out) and
    concatenate along the output dim -> one (H, 3H) weight, one (1, 3H) bias.
    The weight is cast to the matmul dtype here so its DMA is narrower too.
    """
    H = bq.shape[0]
    wqkv = jnp.concatenate([wq.T, wk.T, wv.T], axis=1).astype(matmul_dtype)
    bqkv = jnp.concatenate([bq, bk, bv]).reshape(1, 3 * H).astype(jnp.float32)
    return wqkv, bqkv


def _generation_params():
    """Per-generation tiling / VMEM knobs (safe defaults if kind is unknown)."""
    kind = ""
    try:
        kind = jax.devices()[0].device_kind.lower()
    except Exception:
        pass
    if "v5 lite" in kind or "v5e" in kind or "v5lite" in kind:
        # 4x128^2 MXU -> M=128 already fills it; 128 MiB VMEM.
        return dict(target_rows=128, max_rows=2048, num_cores=1,
                    vmem_budget=100 << 20)
    if "v6" in kind:
        # 2x256^2 MXU; 128 MiB VMEM -> allow big batch tiles.
        return dict(target_rows=256, max_rows=4096, num_cores=1,
                    vmem_budget=100 << 20)
    if "v7" in kind:
        # 2 TensorCores/chip, 64 MiB VMEM -> keep >=2 grid steps, smaller cap.
        return dict(target_rows=256, max_rows=1024, num_cores=2,
                    vmem_budget=48 << 20)
    return dict(target_rows=256, max_rows=1024, num_cores=1,
                vmem_budget=48 << 20)


def _pick_batch_tile(B, S, *, target_rows, max_rows, min_grid):
    """Batch rows per grid step: Bt divides B, Bt*S targets the MXU M dim,
    Bt*S <= max_rows (VMEM), and B/Bt >= min_grid so every TensorCore gets
    at least one grid step."""
    divisors = [d for d in range(1, B + 1) if B % d == 0]
    cands = [d for d in divisors if (B // d) >= min_grid and d * S <= max_rows]
    if not cands:
        cands = [d for d in divisors if d * S <= max_rows] or [1]
    for d in cands:                                   # smallest tile hitting the
        if d * S >= target_rows and d % 8 == 0:       # M target, sublane-dense
            return d
    for d in cands:
        if d * S >= target_rows:
            return d
    return cands[-1]                                  # largest that fits


def self_attention(x, wqkv, bqkv, *, matmul_dtype=None, approx_reciprocal=True):
    """x: (B, S, H).  wqkv: (H, 3H), bqkv: (1, 3H) from fuse_qkv_params().

    matmul_dtype defaults to wqkv.dtype (accumulation is always f32).
    approx_reciprocal=False gives an exact-division softmax (tighter parity
    with the PyTorch reference) at a small VALU cost.
    """
    B, S, H = x.shape
    assert wqkv.shape == (H, 3 * H) and bqkv.shape == (1, 3 * H)
    out_dtype = x.dtype
    if matmul_dtype is None:
        matmul_dtype = wqkv.dtype

    # Halve the streamed-x DMA bytes when the matmul dtype is narrower than x.
    if jnp.dtype(matmul_dtype).itemsize < jnp.dtype(x.dtype).itemsize:
        x = x.astype(matmul_dtype)

    gen = _generation_params()
    Bt = _pick_batch_tile(B, S,
                          target_rows=gen["target_rows"],
                          max_rows=gen["max_rows"],
                          min_grid=max(1, min(gen["num_cores"], B)))
    grid = (B // Bt,)

    # --- VMEM limit: actual blocks (+ double buffers) + f32 temporaries. ---
    mm_item = jnp.dtype(matmul_dtype).itemsize
    x_bytes = Bt * S * H * jnp.dtype(x.dtype).itemsize
    o_bytes = Bt * H * jnp.dtype(out_dtype).itemsize
    w_bytes = H * 3 * H * jnp.dtype(wqkv.dtype).itemsize
    b_bytes = 3 * H * jnp.dtype(bqkv.dtype).itemsize
    tmp_bytes = (Bt * S * 3 * H * 4            # f32 qkv accumulator
                 + Bt * S * 3 * H * mm_item    # q/k/v operand casts
                 + 2 * Bt * S * S * 4)         # scores + exp
    est = 2 * (x_bytes + o_bytes) + 2 * (w_bytes + b_bytes) + tmp_bytes
    vmem_limit = int(min(max(32 << 20, int(est * 1.5) + (8 << 20)),
                         gen["vmem_budget"]))

    # --- Cost estimate so XLA schedules surrounding ops around the call. ---
    flops = (2 * B * S * H * 3 * H      # QKV projection
             + 2 * B * S * S * H        # scores
             + 2 * B * S * S            # weighted row-sum matvec
             + 2 * B * S * H)           # context matvec
    cost = pl.CostEstimate(
        flops=int(flops),
        transcendentals=int(B * S * S),
        bytes_accessed=int(x_bytes * (B // Bt) + w_bytes + b_bytes
                           + o_bytes * (B // Bt)))

    kernel = functools.partial(self_attention_kernel,
                               matmul_dtype=matmul_dtype,
                               approx_recip=approx_reciprocal)

    def run(single_buffer_weights):
        const_kwargs = {}
        if single_buffer_weights and hasattr(pl, "Buffered"):
            # Grid-invariant blocks: one buffer is enough (never re-fetched).
            const_kwargs = dict(pipeline_mode=pl.Buffered(1))
        in_specs = [
            pl.BlockSpec((Bt, S, H), lambda b: (b, 0, 0)),               # x
            pl.BlockSpec((H, 3 * H), lambda b: (0, 0), **const_kwargs),  # Wqkv
            pl.BlockSpec((1, 3 * H), lambda b: (0, 0), **const_kwargs),  # bias
        ]
        return pl.pallas_call(
            kernel,
            out_shape=jax.ShapeDtypeStruct((B, H), out_dtype),
            grid_spec=pltpu.PrefetchScalarGridSpec(
                num_scalar_prefetch=0,
                grid=grid,
                in_specs=in_specs,
                out_specs=pl.BlockSpec((Bt, H), lambda b: (b, 0)),
            ),
            compiler_params=pltpu.CompilerParams(
                dimension_semantics=("parallel",),
                vmem_limit_bytes=vmem_limit),
            cost_estimate=cost,
        )(x, wqkv, bqkv)

    try:
        return run(True)
    except Exception:
        # TODO(synk): drop this fallback once pipeline_mode=pl.Buffered(1) is
        # confirmed supported for top-level pallas_call on the target jax.
        return run(False)


def self_attention_ref(x, wq, bq, wk, bk, wv, bv):
    """Pure-JAX reference mirroring the PyTorch forward (high precision)."""
    hp = jax.lax.Precision.HIGHEST
    q = jnp.einsum("bsh,oh->bso", x, wq, precision=hp) + bq
    k = jnp.einsum("bsh,oh->bso", x, wk, precision=hp) + bk
    v = jnp.einsum("bsh,oh->bso", x, wv, precision=hp) + bv
    scores = jnp.einsum("bqd,bkd->bqk", q, k, precision=hp)
    scores = jax.nn.softmax(scores, axis=-1)
    out = jnp.einsum("bqk,bkd->bqd", scores, v, precision=hp)
    return out.mean(axis=1)


if __name__ == "__main__":
    # (batch, seq, hidden) -- hidden_dim=256 as in the module; S%8==0 and
    # H%128==0 keep every block lane/sublane dense.
    B, S, H = 2, 8, 256

    key = jax.random.PRNGKey(0)
    kx, kwq, kbq, kwk, kbk, kwv, kbv = jax.random.split(key, 7)

    x = jax.random.normal(kx, (B, S, H), dtype=jnp.float32)
    # Deterministic parameter init (torch Linear-like uniform range).
    bound = 1.0 / (H ** 0.5)
    wq = jax.random.uniform(kwq, (H, H), jnp.float32, -bound, bound)
    bq = jax.random.uniform(kbq, (H,), jnp.float32, -bound, bound)
    wk = jax.random.uniform(kwk, (H, H), jnp.float32, -bound, bound)
    bk = jax.random.uniform(kbk, (H,), jnp.float32, -bound, bound)
    wv = jax.random.uniform(kwv, (H, H), jnp.float32, -bound, bound)
    bv = jax.random.uniform(kbv, (H,), jnp.float32, -bound, bound)

    ref = self_attention_ref(x, wq, bq, wk, bk, wv, bv)

    # --- Exact f32 path with exact softmax division (tightest parity). ---
    wqkv32, bqkv32 = fuse_qkv_params(wq, bq, wk, bk, wv, bv,
                                     matmul_dtype=jnp.float32)   # once at init
    out_exact = jax.block_until_ready(
        self_attention(x, wqkv32, bqkv32, approx_reciprocal=False))
    assert out_exact.shape == (B, H)
    assert jnp.allclose(out_exact, ref, atol=1e-4, rtol=1e-4)

    # --- Same weights, EUP approximate reciprocal (default fast path). ---
    out_approx = jax.block_until_ready(self_attention(x, wqkv32, bqkv32))
    assert jnp.allclose(out_approx, ref, atol=3e-3, rtol=3e-3)

    # --- bf16-operand path (full-rate MXU on every generation incl. v5e;
    #     halved weight + activation DMA).  Loose tolerance: smoke test. ---
    wqkv16, bqkv16 = fuse_qkv_params(wq, bq, wk, bk, wv, bv,
                                     matmul_dtype=jnp.bfloat16)
    out_bf16 = jax.block_until_ready(self_attention(x, wqkv16, bqkv16))
    assert out_bf16.shape == (B, H)
    assert bool(jnp.all(jnp.isfinite(out_bf16)))
    assert jnp.allclose(out_bf16, ref, atol=1e-1, rtol=1e-1)

    print("KERNEL_OK")
</pallas_src>

<mosaic_0001>
module attributes {stable_mosaic.version = 11 : i64} {
  func.func @self_attention_kernel(%arg0: i32, %arg1: memref<2x8x256xf32, #tpu.memory_space<vmem>>, %arg2: memref<256x768xf32, #tpu.memory_space<vmem>>, %arg3: memref<1x768xf32, #tpu.memory_space<vmem>>, %arg4: memref<2x256xf32, #tpu.memory_space<vmem>>) attributes {dimension_semantics = [#tpu.dimension_semantics<parallel>], iteration_bounds = array<i64: 1>, scalar_prefetch = 0 : i64, scratch_operands = 0 : i64, tpu.core_type = #tpu.core_type<tc>, window_params = [{transform_indices = @transform_0, window_bounds = array<i64: 2, 8, 256>}, {pipeline_mode = #tpu.pipeline_mode<synchronous>, transform_indices = @transform_1, window_bounds = array<i64: 256, 768>}, {pipeline_mode = #tpu.pipeline_mode<synchronous>, transform_indices = @transform_2, window_bounds = array<i64: 1, 768>}, {transform_indices = @transform_3, window_bounds = array<i64: 2, 256>}]} {
    %c0 = arith.constant 0 : index
    %c0_0 = arith.constant 0 : index
    %c0_1 = arith.constant 0 : index
    %0 = vector.load %arg1[%c0, %c0_0, %c0_1] : memref<2x8x256xf32, #tpu.memory_space<vmem>>, vector<2x8x256xf32>
    %1 = vector.shape_cast %0 : vector<2x8x256xf32> to vector<16x256xf32>
    %c0_2 = arith.constant 0 : index
    %c0_3 = arith.constant 0 : index
    %2 = vector.load %arg2[%c0_2, %c0_3] : memref<256x768xf32, #tpu.memory_space<vmem>>, vector<256x768xf32>
    %cst = arith.constant dense<0.000000e+00> : vector<16x768xf32>
    %3 = tpu.matmul %1, %2, %cst {dimension_numbers = #tpu.dot_dimension_numbers<[1], [0], [0], [1], [0, 0, 1, 1], [], []>} : vector<16x256xf32>, vector<256x768xf32>, vector<16x768xf32> -> vector<16x768xf32>
    %c0_4 = arith.constant 0 : index
    %c0_5 = arith.constant 0 : index
    %4 = vector.load %arg3[%c0_4, %c0_5] : memref<1x768xf32, #tpu.memory_space<vmem>>, vector<1x768xf32>
    %5 = vector.broadcast %4 : vector<1x768xf32> to vector<16x768xf32>
    %6 = arith.addf %3, %5 : vector<16x768xf32>
    %7 = vector.shape_cast %6 : vector<16x768xf32> to vector<2x8x768xf32>
    %8 = vector.extract_strided_slice %7 {offsets = [0, 0, 0], sizes = [2, 8, 256], strides = [1, 1, 1]} : vector<2x8x768xf32> to vector<2x8x256xf32>
    %9 = vector.extract_strided_slice %7 {offsets = [0, 0, 256], sizes = [2, 8, 256], strides = [1, 1, 1]} : vector<2x8x768xf32> to vector<2x8x256xf32>
    %10 = vector.extract_strided_slice %7 {offsets = [0, 0, 512], sizes = [2, 8, 256], strides = [1, 1, 1]} : vector<2x8x768xf32> to vector<2x8x256xf32>
    "tpu.trace_start"() <{level = 10 : i32, message = "bqd,bkd->bqk"}> : () -> ()
    %cst_6 = arith.constant dense<0.000000e+00> : vector<2x8x8xf32>
    %11 = tpu.matmul %8, %9, %cst_6 {dimension_numbers = #tpu.dot_dimension_numbers<[2], [2], [1], [1], [0, 0, 0, 1, 1, 1], [0], [0]>} : vector<2x8x256xf32>, vector<2x8x256xf32>, vector<2x8x8xf32> -> vector<2x8x8xf32>
    "tpu.trace_stop"() : () -> ()
    %cst_7 = arith.constant dense<0xFF800000> : vector<2x8xf32>
    %12 = vector.multi_reduction <maximumf>, %11, %cst_7 [2] : vector<2x8x8xf32> to vector<2x8xf32>
    %13 = vector.shape_cast %12 : vector<2x8xf32> to vector<2x8x1xf32>
    %14 = vector.broadcast %13 : vector<2x8x1xf32> to vector<2x8x8xf32>
    %15 = arith.subf %11, %14 : vector<2x8x8xf32>
    %16 = math.exp %15 : vector<2x8x8xf32>
    %cst_8 = arith.constant dense<0.000000e+00> : vector<2x8xf32>
    %17 = vector.multi_reduction <add>, %16, %cst_8 [2] : vector<2x8x8xf32> to vector<2x8xf32>
    %18 = vector.shape_cast %17 : vector<2x8xf32> to vector<2x8x1xf32>
    %cst_9 = arith.constant 8.000000e+00 : f32
    %19 = vector.broadcast %cst_9 : f32 to vector<2x8x1xf32>
    %20 = arith.mulf %19, %18 : vector<2x8x1xf32>
    %cst_10 = arith.constant 1.000000e+00 : f32
    %21 = vector.broadcast %cst_10 : f32 to vector<2x8x1xf32>
    %22 = arith.divf %21, %20 : vector<2x8x1xf32>
    "tpu.trace_start"() <{level = 10 : i32, message = "bqx,bqk->bxk"}> : () -> ()
    %cst_11 = arith.constant dense<0.000000e+00> : vector<2x1x8xf32>
    %23 = tpu.matmul %22, %16, %cst_11 {dimension_numbers = #tpu.dot_dimension_numbers<[1], [1], [2], [2], [0, 0, 0, 2, 1, 2], [0], [0]>} : vector<2x8x1xf32>, vector<2x8x8xf32>, vector<2x1x8xf32> -> vector<2x1x8xf32>
    "tpu.trace_stop"() : () -> ()
    "tpu.trace_start"() <{level = 10 : i32, message = "bxk,bkh->bxh"}> : () -> ()
    %cst_12 = arith.constant dense<0.000000e+00> : vector<2x1x256xf32>
    %24 = tpu.matmul %23, %10, %cst_12 {dimension_numbers = #tpu.dot_dimension_numbers<[2], [1], [1], [2], [0, 0, 0, 1, 1, 2], [0], [0]>} : vector<2x1x8xf32>, vector<2x8x256xf32>, vector<2x1x256xf32> -> vector<2x1x256xf32>
    "tpu.trace_stop"() : () -> ()
    %25 = vector.shape_cast %24 : vector<2x1x256xf32> to vector<2x256xf32>
    %c0_13 = arith.constant 0 : index
    %c0_14 = arith.constant 0 : index
    %26 = vector.load %arg4[%c0_13, %c0_14] : memref<2x256xf32, #tpu.memory_space<vmem>>, vector<2x256xf32>
    tpu.vector_store %arg4[%c0_13, %c0_14], %25 {strides = array<i32>} : memref<2x256xf32, #tpu.memory_space<vmem>>, vector<2x256xf32>,
    return
  }
  func.func @transform_0(%arg0: i32) -> (i32, i32, i32) {
    %c0_i32 = arith.constant 0 : i32
    %c0_i32_0 = arith.constant 0 : i32
    %c0_i32_1 = arith.constant 0 : i32
    return %arg0, %c0_i32, %c0_i32_0 : i32, i32, i32
  }
  func.func @transform_1(%arg0: i32) -> (i32, i32) {
    %c0_i32 = arith.constant 0 : i32
    %c0_i32_0 = arith.constant 0 : i32
    %c0_i32_1 = arith.constant 0 : i32
    return %c0_i32, %c0_i32_0 : i32, i32
  }
  func.func @transform_2(%arg0: i32) -> (i32, i32) {
    %c0_i32 = arith.constant 0 : i32
    %c0_i32_0 = arith.constant 0 : i32
    %c0_i32_1 = arith.constant 0 : i32
    return %c0_i32, %c0_i32_0 : i32, i32
  }
  func.func @transform_3(%arg0: i32) -> (i32, i32) {
    %c0_i32 = arith.constant 0 : i32
    %c0_i32_0 = arith.constant 0 : i32
    return %arg0, %c0_i32 : i32, i32
  }
}

module attributes {stable_mosaic.version = 11 : i64} {
  func.func @self_attention_kernel(%arg0: i32, %arg1: memref<2x8x256xf32, #tpu.memory_space<vmem>>, %arg2: memref<256x768xf32, #tpu.memory_space<vmem>>, %arg3: memref<1x768xf32, #tpu.memory_space<vmem>>, %arg4: memref<2x256xf32, #tpu.memory_space<vmem>>) attributes {dimension_semantics = [#tpu.dimension_semantics<parallel>], iteration_bounds = array<i64: 1>, scalar_prefetch = 0 : i64, scratch_operands = 0 : i64, tpu.core_type = #tpu.core_type<tc>, window_params = [{transform_indices = @transform_0, window_bounds = array<i64: 2, 8, 256>}, {pipeline_mode = #tpu.pipeline_mode<synchronous>, transform_indices = @transform_1, window_bounds = array<i64: 256, 768>}, {pipeline_mode = #tpu.pipeline_mode<synchronous>, transform_indices = @transform_2, window_bounds = array<i64: 1, 768>}, {transform_indices = @transform_3, window_bounds = array<i64: 2, 256>}]} {
    %c0 = arith.constant 0 : index
    %c0_0 = arith.constant 0 : index
    %c0_1 = arith.constant 0 : index
    %0 = vector.load %arg1[%c0, %c0_0, %c0_1] : memref<2x8x256xf32, #tpu.memory_space<vmem>>, vector<2x8x256xf32>
    %1 = vector.shape_cast %0 : vector<2x8x256xf32> to vector<16x256xf32>
    %c0_2 = arith.constant 0 : index
    %c0_3 = arith.constant 0 : index
    %2 = vector.load %arg2[%c0_2, %c0_3] : memref<256x768xf32, #tpu.memory_space<vmem>>, vector<256x768xf32>
    %cst = arith.constant dense<0.000000e+00> : vector<16x768xf32>
    %3 = tpu.matmul %1, %2, %cst {dimension_numbers = #tpu.dot_dimension_numbers<[1], [0], [0], [1], [0, 0, 1, 1], [], []>} : vector<16x256xf32>, vector<256x768xf32>, vector<16x768xf32> -> vector<16x768xf32>
    %c0_4 = arith.constant 0 : index
    %c0_5 = arith.constant 0 : index
    %4 = vector.load %arg3[%c0_4, %c0_5] : memref<1x768xf32, #tpu.memory_space<vmem>>, vector<1x768xf32>
    %5 = vector.broadcast %4 : vector<1x768xf32> to vector<16x768xf32>
    %6 = arith.addf %3, %5 : vector<16x768xf32>
    %7 = vector.shape_cast %6 : vector<16x768xf32> to vector<2x8x768xf32>
    %8 = vector.extract_strided_slice %7 {offsets = [0, 0, 0], sizes = [2, 8, 256], strides = [1, 1, 1]} : vector<2x8x768xf32> to vector<2x8x256xf32>
    %9 = vector.extract_strided_slice %7 {offsets = [0, 0, 256], sizes = [2, 8, 256], strides = [1, 1, 1]} : vector<2x8x768xf32> to vector<2x8x256xf32>
    %10 = vector.extract_strided_slice %7 {offsets = [0, 0, 512], sizes = [2, 8, 256], strides = [1, 1, 1]} : vector<2x8x768xf32> to vector<2x8x256xf32>
    "tpu.trace_start"() <{level = 10 : i32, message = "bqd,bkd->bqk"}> : () -> ()
    %cst_6 = arith.constant dense<0.000000e+00> : vector<2x8x8xf32>
    %11 = tpu.matmul %8, %9, %cst_6 {dimension_numbers = #tpu.dot_dimension_numbers<[2], [2], [1], [1], [0, 0, 0, 1, 1, 1], [0], [0]>} : vector<2x8x256xf32>, vector<2x8x256xf32>, vector<2x8x8xf32> -> vector<2x8x8xf32>
    "tpu.trace_stop"() : () -> ()
    %cst_7 = arith.constant dense<0xFF800000> : vector<2x8xf32>
    %12 = vector.multi_reduction <maximumf>, %11, %cst_7 [2] : vector<2x8x8xf32> to vector<2x8xf32>
    %13 = vector.shape_cast %12 : vector<2x8xf32> to vector<2x8x1xf32>
    %14 = vector.broadcast %13 : vector<2x8x1xf32> to vector<2x8x8xf32>
    %15 = arith.subf %11, %14 : vector<2x8x8xf32>
    %16 = math.exp %15 : vector<2x8x8xf32>
    %cst_8 = arith.constant dense<0.000000e+00> : vector<2x8xf32>
    %17 = vector.multi_reduction <add>, %16, %cst_8 [2] : vector<2x8x8xf32> to vector<2x8xf32>
    %18 = vector.shape_cast %17 : vector<2x8xf32> to vector<2x8x1xf32>
    %cst_9 = arith.constant 8.000000e+00 : f32
    %19 = vector.broadcast %cst_9 : f32 to vector<2x8x1xf32>
    %20 = arith.mulf %19, %18 : vector<2x8x1xf32>
    %cst_10 = arith.constant 1.000000e+00 : f32
    %21 = vector.broadcast %cst_10 : f32 to vector<2x8x1xf32>
    %22 = arith.divf %21, %20 : vector<2x8x1xf32>
    "tpu.trace_start"() <{level = 10 : i32, message = "bqx,bqk->bxk"}> : () -> ()
    %cst_11 = arith.constant dense<0.000000e+00> : vector<2x1x8xf32>
    %23 = tpu.matmul %22, %16, %cst_11 {dimension_numbers = #tpu.dot_dimension_numbers<[1], [1], [2], [2], [0, 0, 0, 2, 1, 2], [0], [0]>} : vector<2x8x1xf32>, vector<2x8x8xf32>, vector<2x1x8xf32> -> vector<2x1x8xf32>
    "tpu.trace_stop"() : () -> ()
    "tpu.trace_start"() <{level = 10 : i32, message = "bxk,bkh->bxh"}> : () -> ()
    %cst_12 = arith.constant dense<0.000000e+00> : vector<2x1x256xf32>
    %24 = tpu.matmul %23, %10, %cst_12 {dimension_numbers = #tpu.dot_dimension_numbers<[2], [1], [1], [2], [0, 0, 0, 1, 1, 2], [0], [0]>} : vector<2x1x8xf32>, vector<2x8x256xf32>, vector<2x1x256xf32> -> vector<2x1x256xf32>
    "tpu.trace_stop"() : () -> ()
    %25 = vector.shape_cast %24 : vector<2x1x256xf32> to vector<2x256xf32>
    %c0_13 = arith.constant 0 : index
    %c0_14 = arith.constant 0 : index
    %26 = vector.load %arg4[%c0_13, %c0_14] : memref<2x256xf32, #tpu.memory_space<vmem>>, vector<2x256xf32>
    tpu.vector_store %arg4[%c0_13, %c0_14], %25 {strides = array<i32>} : memref<2x256xf32, #tpu.memory_space<vmem>>, vector<2x256xf32>,
    return
  }
  func.func @transform_0(%arg0: i32) -> (i32, i32, i32) {
    %c0_i32 = arith.constant 0 : i32
    %c0_i32_0 = arith.constant 0 : i32
    %c0_i32_1 = arith.constant 0 : i32
    return %arg0, %c0_i32, %c0_i32_0 : i32, i32, i32
  }
  func.func @transform_1(%arg0: i32) -> (i32, i32) {
    %c0_i32 = arith.constant 0 : i32
    %c0_i32_0 = arith.constant 0 : i32
    %c0_i32_1 = arith.constant 0 : i32
    return %c0_i32, %c0_i32_0 : i32, i32
  }
  func.func @transform_2(%arg0: i32) -> (i32, i32) {
    %c0_i32 = arith.constant 0 : i32
    %c0_i32_0 = arith.constant 0 : i32
    %c0_i32_1 = arith.constant 0 : i32
    return %c0_i32, %c0_i32_0 : i32, i32
  }
  func.func @transform_3(%arg0: i32) -> (i32, i32) {
    %c0_i32 = arith.constant 0 : i32
    %c0_i32_0 = arith.constant 0 : i32
    return %arg0, %c0_i32 : i32, i32
  }
}

</mosaic_0001>

<llo_original>
// kernel: tpu_custom_call.1
$region0: #{tpu_custom_call.1}
  #allocation0 [shape = 'u32[]', space=smem, size = 0x4, offset = 0x4, fixed_abs, tag = 'smem constant byte address 0x4 - core index']
  #allocation1 [shape = 'u32[144,128]{1,0:T(1,128)}', space=vmem, size = 0x12000, scoped, tag = 'internal scratch']
  %s0 = inlined_call_operand.hbm [shape: f32[2,8,256], index: 0, kind: input, shape index: {}]
  %s1 = inlined_call_operand.hbm [shape: f32[256,768], index: 1, kind: input, shape index: {}]
  %s2 = inlined_call_operand.hbm [shape: f32[1,768], index: 2, kind: input, shape index: {}]
  %s3 = inlined_call_operand.hbm [shape: f32[2,256], index: 3, kind: output, shape index: {}]
  %s4 = sld [smem:[#allocation0]]
  $region34: #{tpu_custom_call.1} parent=0
    _
  %s6 = ssub.s32 1, %s4
  %s7 = scalar_select 0, %s6, %s4
  $region1: #{tpu_custom_call.1} parent=0
    #allocation2 [shape = 'u8[16384]{0}', space=vmem, size = 0x4000, scoped, tag = 'input window, operand 0, single buffered']
    #allocation3 [shape = 's32[1]{0}', space=sflag, size = 0x4, scoped, tag = 'scoped memory for tpu_custom_call.1']
    #allocation4 [shape = 's32[1]{0}', space=sflag, size = 0x4, scoped, tag = 'scoped memory for tpu_custom_call.1']
    #allocation5 [shape = 'u8[786432]{0}', space=vmem, size = 0xc0000, scoped, tag = 'input window, operand 1, single buffered']
    #allocation6 [shape = 's32[1]{0}', space=sflag, size = 0x4, scoped, tag = 'scoped memory for tpu_custom_call.1']
    #allocation7 [shape = 'u8[3072]{0}', space=vmem, size = 0xc00, scoped, tag = 'input window, operand 2, single buffered']
    #allocation8 [shape = 'u8[2048]{0}', space=vmem, size = 0x800, scoped, tag = 'output window, operand 0, single buffered']
    %8 = vsyncpa [#allocation3], 0
    %9 = vsyncpa [#allocation6], 0
    %10 = vsyncpa [#allocation4], 0
    // Predicated region
    $region2: #{tpu_custom_call.1} parent=1 // pred_check
      _
    $region3: #{tpu_custom_call.1} parent=1 // pred_check_branch
      %12 = sbr.rel (0) target = $region5
    $region4: #{tpu_custom_call.1} parent=1 // pred_region
      %s14 = ssub.s32 512, 512
      %15 = vsyncadd [#allocation3], %s14
      %s16 = sshll.u32 [#allocation2], 4
      %s17 = int_to_ptr.vmem [resolvable:$true] %s16
      %22 = dma.hbm_to_vmem [thread:$0]  %s0, 512, %s17, [#allocation3], 256, 256, 16
    $region5: #{tpu_custom_call.1} parent=1 // pred_fallthru
      _
    // Predicated region
    $region6: #{tpu_custom_call.1} parent=1 // pred_check
      _
    $region7: #{tpu_custom_call.1} parent=1 // pred_check_branch
      %24 = sbr.rel (0) target = $region9
    $region8: #{tpu_custom_call.1} parent=1 // pred_region
      %s26 = ssub.s32 24576, 24576
      %27 = vsyncadd [#allocation6], %s26
      %s28 = sshll.u32 [#allocation5], 4
      %s29 = int_to_ptr.vmem [resolvable:$true] %s28
      %34 = dma.hbm_to_vmem [thread:$0]  %s1, 24576, %s29, [#allocation6], 768, 768, 48
    $region9: #{tpu_custom_call.1} parent=1 // pred_fallthru
      _
    // Predicated region
    $region10: #{tpu_custom_call.1} parent=1 // pred_check
      _
    $region11: #{tpu_custom_call.1} parent=1 // pred_check_branch
      %36 = sbr.rel (0) target = $region13
    $region12: #{tpu_custom_call.1} parent=1 // pred_region
      %s38 = ssub.s32 96, 96
      %39 = vsyncadd [#allocation6], %s38
      %s41 = sshll.u32 [#allocation7], 4
      %s42 = int_to_ptr.vmem [resolvable:$true] %s41
      %44 = dma.hbm_to_vmem [thread:$0]  %s2, 96, %s42, [#allocation6]
    $region13: #{tpu_custom_call.1} parent=1 // pred_fallthru
      _
    // Predicated region
    $region14: #{tpu_custom_call.1} parent=1 // pred_check
      _
    $region15: #{tpu_custom_call.1} parent=1 // pred_check_branch
      %46 = sbr.rel (0) target = $region17
    $region16: #{tpu_custom_call.1} parent=1 // pred_region
      %47 = dma.done [#allocation3], 512
    $region17: #{tpu_custom_call.1} parent=1 // pred_fallthru
      _
    // Predicated region
    $region18: #{tpu_custom_call.1} parent=1 // pred_check
      _
    $region19: #{tpu_custom_call.1} parent=1 // pred_check_branch
      %49 = sbr.rel (0) target = $region21
    $region20: #{tpu_custom_call.1} parent=1 // pred_region
      %50 = dma.done [#allocation6], 24576
    $region21: #{tpu_custom_call.1} parent=1 // pred_fallthru
      _
    // Predicated region
    $region22: #{tpu_custom_call.1} parent=1 // pred_check
      _
    $region23: #{tpu_custom_call.1} parent=1 // pred_check_branch
      %52 = sbr.rel (0) target = $region25
    $region24: #{tpu_custom_call.1} parent=1 // pred_region
      %53 = dma.done [#allocation6], 96
    $region25: #{tpu_custom_call.1} parent=1 // pred_fallthru
      _
    %v54 = vld [vmem:[#allocation2] sm:$0xff]
    %v55 = vld [vmem:[#allocation2 + $0x8] sm:$0xff]
    %v56 = vld [vmem:[#allocation2 + $0x10] sm:$0xff]
    %v57 = vld [vmem:[#allocation2 + $0x18] sm:$0xff]
    %v58 = vld [vmem:[#allocation5] sm:$0xff]
    %v59 = vld [vmem:[#allocation5 + $0x8] sm:$0xff]
    %v60 = vld [vmem:[#allocation5 + $0x10] sm:$0xff]
    %v61 = vld [vmem:[#allocation5 + $0x18] sm:$0xff]
    %v62 = vld [vmem:[#allocation5 + $0x20] sm:$0xff]
    %v63 = vld [vmem:[#allocation5 + $0x28] sm:$0xff]
    %v64 = vld [vmem:[#allocation5 + $0x30] sm:$0xff]
    %v65 = vld [vmem:[#allocation5 + $0x38] sm:$0xff]
    %v66 = vld [vmem:[#allocation5 + $0x40] sm:$0xff]
    %v67 = vld [vmem:[#allocation5 + $0x48] sm:$0xff]
    %v68 = vld [vmem:[#allocation5 + $0x50] sm:$0xff]
    %v69 = vld [vmem:[#allocation5 + $0x58] sm:$0xff]
    %v70 = vld [vmem:[#allocation5 + $0x60] sm:$0xff]
    %v71 = vld [vmem:[#allocation5 + $0x68] sm:$0xff]
    %v72 = vld [vmem:[#allocation5 + $0x70] sm:$0xff]
    %v73 = vld [vmem:[#allocation5 + $0x78] sm:$0xff]
    %v74 = vld [vmem:[#allocation5 + $0x80] sm:$0xff]
    %v75 = vld [vmem:[#allocation5 + $0x88] sm:$0xff]
    %v76 = vld [vmem:[#allocation5 + $0x90] sm:$0xff]
    %v77 = vld [vmem:[#allocation5 + $0x98] sm:$0xff]
    %v78 = vld [vmem:[#allocation5 + $0xa0] sm:$0xff]
    %v79 = vld [vmem:[#allocation5 + $0xa8] sm:$0xff]
    %v80 = vld [vmem:[#allocation5 + $0xb0] sm:$0xff]
    %v81 = vld [vmem:[#allocation5 + $0xb8] sm:$0xff]
    %v82 = vld [vmem:[#allocation5 + $0xc0] sm:$0xff]
    %v83 = vld [vmem:[#allocation5 + $0xc8] sm:$0xff]
    %v84 = vld [vmem:[#allocation5 + $0xd0] sm:$0xff]
    %v85 = vld [vmem:[#allocation5 + $0xd8] sm:$0xff]
    %v86 = vld [vmem:[#allocation5 + $0xe0] sm:$0xff]
    %v87 = vld [vmem:[#allocation5 + $0xe8] sm:$0xff]
    %v88 = vld [vmem:[#allocation5 + $0xf0] sm:$0xff]
    %v89 = vld [vmem:[#allocation5 + $0xf8] sm:$0xff]
    %v90 = vld [vmem:[#allocation5 + $0x100] sm:$0xff]
    %v91 = vld [vmem:[#allocation5 + $0x108] sm:$0xff]
    %v92 = vld [vmem:[#allocation5 + $0x110] sm:$0xff]
    %v93 = vld [vmem:[#allocation5 + $0x118] sm:$0xff]
    %v94 = vld [vmem:[#allocation5 + $0x120] sm:$0xff]
    %v95 = vld [vmem:[#allocation5 + $0x128] sm:$0xff]
    %v96 = vld [vmem:[#allocation5 + $0x130] sm:$0xff]
    %v97 = vld [vmem:[#allocation5 + $0x138] sm:$0xff]
    %v98 = vld [vmem:[#allocation5 + $0x140] sm:$0xff]
    %v99 = vld [vmem:[#allocation5 + $0x148] sm:$0xff]
    %v100 = vld [vmem:[#allocation5 + $0x150] sm:$0xff]
    %v101 = vld [vmem:[#allocation5 + $0x158] sm:$0xff]
    %v102 = vld [vmem:[#allocation5 + $0x160] sm:$0xff]
    %v103 = vld [vmem:[#allocation5 + $0x168] sm:$0xff]
    %v104 = vld [vmem:[#allocation5 + $0x170] sm:$0xff]
    %v105 = vld [vmem:[#allocation5 + $0x178] sm:$0xff]
    %v106 = vld [vmem:[#allocation5 + $0x180] sm:$0xff]
    %v107 = vld [vmem:[#allocation5 + $0x188] sm:$0xff]
    %v108 = vld [vmem:[#allocation5 + $0x190] sm:$0xff]
    %v109 = vld [vmem:[#allocation5 + $0x198] sm:$0xff]
    %v110 = vld [vmem:[#allocation5 + $0x1a0] sm:$0xff]
    %v111 = vld [vmem:[#allocation5 + $0x1a8] sm:$0xff]
    %v112 = vld [vmem:[#allocation5 + $0x1b0] sm:$0xff]
    %v113 = vld [vmem:[#allocation5 + $0x1b8] sm:$0xff]
    %v114 = vld [vmem:[#allocation5 + $0x1c0] sm:$0xff]
    %v115 = vld [vmem:[#allocation5 + $0x1c8] sm:$0xff]
    %v116 = vld [vmem:[#allocation5 + $0x1d0] sm:$0xff]
    %v117 = vld [vmem:[#allocation5 + $0x1d8] sm:$0xff]
    %v118 = vld [vmem:[#allocation5 + $0x1e0] sm:$0xff]
    %v119 = vld [vmem:[#allocation5 + $0x1e8] sm:$0xff]
    %v120 = vld [vmem:[#allocation5 + $0x1f0] sm:$0xff]
    %v121 = vld [vmem:[#allocation5 + $0x1f8] sm:$0xff]
    %v122 = vld [vmem:[#allocation5 + $0x200] sm:$0xff]
    %v123 = vld [vmem:[#allocation5 + $0x208] sm:$0xff]
    %v124 = vld [vmem:[#allocation5 + $0x210] sm:$0xff]
    %v125 = vld [vmem:[#allocation5 + $0x218] sm:$0xff]
    %v126 = vld [vmem:[#allocation5 + $0x220] sm:$0xff]
    %v127 = vld [vmem:[#allocation5 + $0x228] sm:$0xff]
    %v128 = vld [vmem:[#allocation5 + $0x230] sm:$0xff]
    %v129 = vld [vmem:[#allocation5 + $0x238] sm:$0xff]
    %v130 = vld [vmem:[#allocation5 + $0x240] sm:$0xff]
    %v131 = vld [vmem:[#allocation5 + $0x248] sm:$0xff]
    %v132 = vld [vmem:[#allocation5 + $0x250] sm:$0xff]
    %v133 = vld [vmem:[#allocation5 + $0x258] sm:$0xff]
    %v134 = vld [vmem:[#allocation5 + $0x260] sm:$0xff]
    %v135 = vld [vmem:[#allocation5 + $0x268] sm:$0xff]
    %v136 = vld [vmem:[#allocation5 + $0x270] sm:$0xff]
    %v137 = vld [vmem:[#allocation5 + $0x278] sm:$0xff]
    %v138 = vld [vmem:[#allocation5 + $0x280] sm:$0xff]
    %v139 = vld [vmem:[#allocation5 + $0x288] sm:$0xff]
    %v140 = vld [vmem:[#allocation5 + $0x290] sm:$0xff]
    %v141 = vld [vmem:[#allocation5 + $0x298] sm:$0xff]
    %v142 = vld [vmem:[#allocation5 + $0x2a0] sm:$0xff]
    %v143 = vld [vmem:[#allocation5 + $0x2a8] sm:$0xff]
    %v144 = vld [vmem:[#allocation5 + $0x2b0] sm:$0xff]
    %v145 = vld [vmem:[#allocation5 + $0x2b8] sm:$0xff]
    %v146 = vld [vmem:[#allocation5 + $0x2c0] sm:$0xff]
    %v147 = vld [vmem:[#allocation5 + $0x2c8] sm:$0xff]
    %v148 = vld [vmem:[#allocation5 + $0x2d0] sm:$0xff]
    %v149 = vld [vmem:[#allocation5 + $0x2d8] sm:$0xff]
    %v150 = vld [vmem:[#allocation5 + $0x2e0] sm:$0xff]
    %v151 = vld [vmem:[#allocation5 + $0x2e8] sm:$0xff]
    %v152 = vld [vmem:[#allocation5 + $0x2f0] sm:$0xff]
    %v153 = vld [vmem:[#allocation5 + $0x2f8] sm:$0xff]
    %v154 = vld [vmem:[#allocation5 + $0x300] sm:$0xff]
    %v155 = vld [vmem:[#allocation5 + $0x308] sm:$0xff]
    %v156 = vld [vmem:[#allocation5 + $0x310] sm:$0xff]
    %v157 = vld [vmem:[#allocation5 + $0x318] sm:$0xff]
    %v158 = vld [vmem:[#allocation5 + $0x320] sm:$0xff]
    %v159 = vld [vmem:[#allocation5 + $0x328] sm:$0xff]
    %v160 = vld [vmem:[#allocation5 + $0x330] sm:$0xff]
    %v161 = vld [vmem:[#allocation5 + $0x338] sm:$0xff]
    %v162 = vld [vmem:[#allocation5 + $0x340] sm:$0xff]
    %v163 = vld [vmem:[#allocation5 + $0x348] sm:$0xff]
    %v164 = vld [vmem:[#allocation5 + $0x350] sm:$0xff]
    %v165 = vld [vmem:[#allocation5 + $0x358] sm:$0xff]
    %v166 = vld [vmem:[#allocation5 + $0x360] sm:$0xff]
    %v167 = vld [vmem:[#allocation5 + $0x368] sm:$0xff]
    %v168 = vld [vmem:[#allocation5 + $0x370] sm:$0xff]
    %v169 = vld [vmem:[#allocation5 + $0x378] sm:$0xff]
    %v170 = vld [vmem:[#allocation5 + $0x380] sm:$0xff]
    %v171 = vld [vmem:[#allocation5 + $0x388] sm:$0xff]
    %v172 = vld [vmem:[#allocation5 + $0x390] sm:$0xff]
    %v173 = vld [vmem:[#allocation5 + $0x398] sm:$0xff]
    %v174 = vld [vmem:[#allocation5 + $0x3a0] sm:$0xff]
    %v175 = vld [vmem:[#allocation5 + $0x3a8] sm:$0xff]
    %v176 = vld [vmem:[#allocation5 + $0x3b0] sm:$0xff]
    %v177 = vld [vmem:[#allocation5 + $0x3b8] sm:$0xff]
    %v178 = vld [vmem:[#allocation5 + $0x3c0] sm:$0xff]
    %v179 = vld [vmem:[#allocation5 + $0x3c8] sm:$0xff]
    %v180 = vld [vmem:[#allocation5 + $0x3d0] sm:$0xff]
    %v181 = vld [vmem:[#allocation5 + $0x3d8] sm:$0xff]
    %v182 = vld [vmem:[#allocation5 + $0x3e0] sm:$0xff]
    %v183 = vld [vmem:[#allocation5 + $0x3e8] sm:$0xff]
    %v184 = vld [vmem:[#allocation5 + $0x3f0] sm:$0xff]
    %v185 = vld [vmem:[#allocation5 + $0x3f8] sm:$0xff]
    %v186 = vld [vmem:[#allocation5 + $0x400] sm:$0xff]
    %v187 = vld [vmem:[#allocation5 + $0x408] sm:$0xff]
    %v188 = vld [vmem:[#allocation5 + $0x410] sm:$0xff]
    %v189 = vld [vmem:[#allocation5 + $0x418] sm:$0xff]
    %v190 = vld [vmem:[#allocation5 + $0x420] sm:$0xff]
    %v191 = vld [vmem:[#allocation5 + $0x428] sm:$0xff]
    %v192 = vld [vmem:[#allocation5 + $0x430] sm:$0xff]
    %v193 = vld [vmem:[#allocation5 + $0x438] sm:$0xff]
    %v194 = vld [vmem:[#allocation5 + $0x440] sm:$0xff]
    %v195 = vld [vmem:[#allocation5 + $0x448] sm:$0xff]
    %v196 = vld [vmem:[#allocation5 + $0x450] sm:$0xff]
    %v197 = vld [vmem:[#allocation5 + $0x458] sm:$0xff]
    %v198 = vld [vmem:[#allocation5 + $0x460] sm:$0xff]
    %v199 = vld [vmem:[#allocation5 + $0x468] sm:$0xff]
    %v200 = vld [vmem:[#allocation5 + $0x470] sm:$0xff]
    %v201 = vld [vmem:[#allocation5 + $0x478] sm:$0xff]
    %v202 = vld [vmem:[#allocation5 + $0x480] sm:$0xff]
    %v203 = vld [vmem:[#allocation5 + $0x488] sm:$0xff]
    %v204 = vld [vmem:[#allocation5 + $0x490] sm:$0xff]
    %v205 = vld [vmem:[#allocation5 + $0x498] sm:$0xff]
    %v206 = vld [vmem:[#allocation5 + $0x4a0] sm:$0xff]
    %v207 = vld [vmem:[#allocation5 + $0x4a8] sm:$0xff]
    %v208 = vld [vmem:[#allocation5 + $0x4b0] sm:$0xff]
    %v209 = vld [vmem:[#allocation5 + $0x4b8] sm:$0xff]
    %v210 = vld [vmem:[#allocation5 + $0x4c0] sm:$0xff]
    %v211 = vld [vmem:[#allocation5 + $0x4c8] sm:$0xff]
    %v212 = vld [vmem:[#allocation5 + $0x4d0] sm:$0xff]
    %v213 = vld [vmem:[#allocation5 + $0x4d8] sm:$0xff]
    %v214 = vld [vmem:[#allocation5 + $0x4e0] sm:$0xff]
    %v215 = vld [vmem:[#allocation5 + $0x4e8] sm:$0xff]
    %v216 = vld [vmem:[#allocation5 + $0x4f0] sm:$0xff]
    %v217 = vld [vmem:[#allocation5 + $0x4f8] sm:$0xff]
    %v218 = vld [vmem:[#allocation5 + $0x500] sm:$0xff]
    %v219 = vld [vmem:[#allocation5 + $0x508] sm:$0xff]
    %v220 = vld [vmem:[#allocation5 + $0x510] sm:$0xff]
    %v221 = vld [vmem:[#allocation5 + $0x518] sm:$0xff]
    %v222 = vld [vmem:[#allocation5 + $0x520] sm:$0xff]
    %v223 = vld [vmem:[#allocation5 + $0x528] sm:$0xff]
    %v224 = vld [vmem:[#allocation5 + $0x530] sm:$0xff]
    %v225 = vld [vmem:[#allocation5 + $0x538] sm:$0xff]
    %v226 = vld [vmem:[#allocation5 + $0x540] sm:$0xff]
    %v227 = vld [vmem:[#allocation5 + $0x548] sm:$0xff]
    %v228 = vld [vmem:[#allocation5 + $0x550] sm:$0xff]
    %v229 = vld [vmem:[#allocation5 + $0x558] sm:$0xff]
    %v230 = vld [vmem:[#allocation5 + $0x560] sm:$0xff]
    %v231 = vld [vmem:[#allocation5 + $0x568] sm:$0xff]
    %v232 = vld [vmem:[#allocation5 + $0x570] sm:$0xff]
    %v233 = vld [vmem:[#allocation5 + $0x578] sm:$0xff]
    %v234 = vld [vmem:[#allocation5 + $0x580] sm:$0xff]
    %v235 = vld [vmem:[#allocation5 + $0x588] sm:$0xff]
    %v236 = vld [vmem:[#allocation5 + $0x590] sm:$0xff]
    %v237 = vld [vmem:[#allocation5 + $0x598] sm:$0xff]
    %v238 = vld [vmem:[#allocation5 + $0x5a0] sm:$0xff]
    %v239 = vld [vmem:[#allocation5 + $0x5a8] sm:$0xff]
    %v240 = vld [vmem:[#allocation5 + $0x5b0] sm:$0xff]
    %v241 = vld [vmem:[#allocation5 + $0x5b8] sm:$0xff]
    %v242 = vld [vmem:[#allocation5 + $0x5c0] sm:$0xff]
    %v243 = vld [vmem:[#allocation5 + $0x5c8] sm:$0xff]
    %v244 = vld [vmem:[#allocation5 + $0x5d0] sm:$0xff]
    %v245 = vld [vmem:[#allocation5 + $0x5d8] sm:$0xff]
    %v246 = vld [vmem:[#allocation5 + $0x5e0] sm:$0xff]
    %v247 = vld [vmem:[#allocation5 + $0x5e8] sm:$0xff]
    %v248 = vld [vmem:[#allocation5 + $0x5f0] sm:$0xff]
    %v249 = vld [vmem:[#allocation5 + $0x5f8] sm:$0xff]
    %v250 = vld [vmem:[#allocation7] sm:$0x3f]
    %v252 = vlaneseq
    %v253 = vshrl.u32 %v252, 7
    %v254 = vsub.s32 0, %v253
    %v255 = vrot.slane %v250, %v254
    %v256 = vlaneseq
    %v257 = vshrl.u32 %v256, 7
    %v258 = vsub.s32 1, %v257
    %v259 = vrot.slane %v250, %v258
    %v260 = vlaneseq
    %v261 = vshrl.u32 %v260, 7
    %v262 = vsub.s32 2, %v261
    %v263 = vrot.slane %v250, %v262
    %v264 = vlaneseq
    %v265 = vshrl.u32 %v264, 7
    %v266 = vsub.s32 3, %v265
    %v267 = vrot.slane %v250, %v266
    %v268 = vlaneseq
    %v269 = vshrl.u32 %v268, 7
    %v270 = vsub.s32 4, %v269
    %v271 = vrot.slane %v250, %v270
    %v272 = vlaneseq
    %v273 = vshrl.u32 %v272, 7
    %v274 = vsub.s32 5, %v273
    %v275 = vrot.slane %v250, %v274
    %282 = vmatprep.subr.mxu0 %v149
    %283 = vmatpush1.msra.mxu0 %v148
    %284 = vmatprep.subr.mxu0 %v143
    %285 = vmatpush1.msra.mxu0 %v142
    %286 = vmatprep.subr.mxu0 %v137
    %287 = vmatpush1.msra.mxu0 %v136
    %288 = vmatprep.subr.mxu0 %v131
    %289 = vmatpush1.msra.mxu0 %v130
    %290 = vmatprep.subr.mxu0 %v125
    %291 = vmatpush1.msra.mxu0 %v124
    %292 = vmatprep.subr.mxu0 %v119
    %293 = vmatpush1.msra.mxu0 %v118
    %294 = vmatprep.subr.mxu0 %v113
    %295 = vmatpush1.msra.mxu0 %v112
    %296 = vmatprep.subr.mxu0 %v107
    %297 = vmatpush1.msra.mxu0 %v106
    %298 = vmatprep.subr.mxu0 %v101
    %299 = vmatpush1.msra.mxu0 %v100
    %300 = vmatprep.subr.mxu0 %v95
    %301 = vmatpush1.msra.mxu0 %v94
    %302 = vmatprep.subr.mxu0 %v89
    %303 = vmatpush1.msra.mxu0 %v88
    %304 = vmatprep.subr.mxu0 %v83
    %305 = vmatpush1.msra.mxu0 %v82
    %306 = vmatprep.subr.mxu0 %v77
    %307 = vmatpush1.msra.mxu0 %v76
    %308 = vmatprep.subr.mxu0 %v71
    %309 = vmatpush1.msra.mxu0 %v70
    %310 = vmatprep.subr.mxu0 %v65
    %311 = vmatpush1.msra.mxu0 %v64
    %312 = vmatprep.subr.mxu0 %v59
    %313 = vmatpush1.msra.mxu0 %v58
    %314 = vmatprep.subr.mxu0 %v245
    %315 = vmatpush2.msra.mxu0 %v244
    %316 = vmatprep.subr.mxu0 %v239
    %317 = vmatpush2.msra.mxu0 %v238
    %318 = vmatprep.subr.mxu0 %v233
    %319 = vmatpush2.msra.mxu0 %v232
    %320 = vmatprep.subr.mxu0 %v227
    %321 = vmatpush2.msra.mxu0 %v226
    %322 = vmatprep.subr.mxu0 %v221
    %323 = vmatpush2.msra.mxu0 %v220
    %324 = vmatprep.subr.mxu0 %v215
    %325 = vmatpush2.msra.mxu0 %v214
    %326 = vmatprep.subr.mxu0 %v209
    %327 = vmatpush2.msra.mxu0 %v208
    %328 = vmatprep.subr.mxu0 %v203
    %329 = vmatpush2.msra.mxu0 %v202
    %330 = vmatprep.subr.mxu0 %v197
    %331 = vmatpush2.msra.mxu0 %v196
    %332 = vmatprep.subr.mxu0 %v191
    %333 = vmatpush2.msra.mxu0 %v190
    %334 = vmatprep.subr.mxu0 %v185
    %335 = vmatpush2.msra.mxu0 %v184
    %336 = vmatprep.subr.mxu0 %v179
    %337 = vmatpush2.msra.mxu0 %v178
    %338 = vmatprep.subr.mxu0 %v173
    %339 = vmatpush2.msra.mxu0 %v172
    %340 = vmatprep.subr.mxu0 %v167
    %341 = vmatpush2.msra.mxu0 %v166
    %342 = vmatprep.subr.mxu0 %v161
    %343 = vmatpush2.msra.mxu0 %v160
    %344 = vmatprep.subr.mxu0 %v155
    %345 = vmatpush2.msra.mxu0 %v154
    %346 = vmatprep.mubr.f32.mxu0 %v55
    %347 = vmatmul.mubr.f32.gmra.mxu0 %v54
    %v348 = vpop.f32.mrf.mxu0
    %v349 = vadd.f32 %v255, %v348
    %v350 = vpop.f32.mrf.mxu0
    %v351 = vadd.f32 %v259, %v350
    %352 = vmatprep.mubr.f32.mxu0 %v57
    %353 = vmatmul.mubr.f32.gmra.mxu0 %v56
    %v354 = vpop.f32.mrf.mxu0
    %v355 = vadd.f32 %v255, %v354
    %v356 = vpop.f32.mrf.mxu0
    %v357 = vadd.f32 %v259, %v356
    %358 = vdwg.mxu0
    %359 = vmatprep.subr.mxu0 %v151
    %360 = vmatpush1.msra.mxu0 %v150
    %361 = vmatprep.subr.mxu0 %v145
    %362 = vmatpush1.msra.mxu0 %v144
    %363 = vmatprep.subr.mxu0 %v139
    %364 = vmatpush1.msra.mxu0 %v138
    %365 = vmatprep.subr.mxu0 %v133
    %366 = vmatpush1.msra.mxu0 %v132
    %367 = vmatprep.subr.mxu0 %v127
    %368 = vmatpush1.msra.mxu0 %v126
    %369 = vmatprep.subr.mxu0 %v121
    %370 = vmatpush1.msra.mxu0 %v120
    %371 = vmatprep.subr.mxu0 %v115
    %372 = vmatpush1.msra.mxu0 %v114
    %373 = vmatprep.subr.mxu0 %v109
    %374 = vmatpush1.msra.mxu0 %v108
    %375 = vmatprep.subr.mxu0 %v103
    %376 = vmatpush1.msra.mxu0 %v102
    %377 = vmatprep.subr.mxu0 %v97
    %378 = vmatpush1.msra.mxu0 %v96
    %379 = vmatprep.subr.mxu0 %v91
    %380 = vmatpush1.msra.mxu0 %v90
    %381 = vmatprep.subr.mxu0 %v85
    %382 = vmatpush1.msra.mxu0 %v84
    %383 = vmatprep.subr.mxu0 %v79
    %384 = vmatpush1.msra.mxu0 %v78
    %385 = vmatprep.subr.mxu0 %v73
    %386 = vmatpush1.msra.mxu0 %v72
    %387 = vmatprep.subr.mxu0 %v67
    %388 = vmatpush1.msra.mxu0 %v66
    %389 = vmatprep.subr.mxu0 %v61
    %390 = vmatpush1.msra.mxu0 %v60
    %391 = vmatprep.subr.mxu0 %v247
    %392 = vmatpush2.msra.mxu0 %v246
    %393 = vmatprep.subr.mxu0 %v241
    %394 = vmatpush2.msra.mxu0 %v240
    %395 = vmatprep.subr.mxu0 %v235
    %396 = vmatpush2.msra.mxu0 %v234
    %397 = vmatprep.subr.mxu0 %v229
    %398 = vmatpush2.msra.mxu0 %v228
    %399 = vmatprep.subr.mxu0 %v223
    %400 = vmatpush2.msra.mxu0 %v222
    %401 = vmatprep.subr.mxu0 %v217
    %402 = vmatpush2.msra.mxu0 %v216
    %403 = vmatprep.subr.mxu0 %v211
    %404 = vmatpush2.msra.mxu0 %v210
    %405 = vmatprep.subr.mxu0 %v205
    %406 = vmatpush2.msra.mxu0 %v204
    %407 = vmatprep.subr.mxu0 %v199
    %408 = vmatpush2.msra.mxu0 %v198
    %409 = vmatprep.subr.mxu0 %v193
    %410 = vmatpush2.msra.mxu0 %v192
    %411 = vmatprep.subr.mxu0 %v187
    %412 = vmatpush2.msra.mxu0 %v186
    %413 = vmatprep.subr.mxu0 %v181
    %414 = vmatpush2.msra.mxu0 %v180
    %415 = vmatprep.subr.mxu0 %v175
    %416 = vmatpush2.msra.mxu0 %v174
    %417 = vmatprep.subr.mxu0 %v169
    %418 = vmatpush2.msra.mxu0 %v168
    %419 = vmatprep.subr.mxu0 %v163
    %420 = vmatpush2.msra.mxu0 %v162
    %421 = vmatprep.subr.mxu0 %v157
    %422 = vmatpush2.msra.mxu0 %v156
    %423 = vmatprep.mubr.f32.mxu0 %v55
    %424 = vmatmul.mubr.f32.gmra.mxu0 %v54
    %v425 = vpop.f32.mrf.mxu0
    %v426 = vadd.f32 %v263, %v425
    %v427 = vpop.f32.mrf.mxu0
    %v428 = vadd.f32 %v267, %v427
    %429 = vmatprep.mubr.f32.mxu0 %v57
    %430 = vmatmul.mubr.f32.gmra.mxu0 %v56
    %v431 = vpop.f32.mrf.mxu0
    %v432 = vadd.f32 %v263, %v431
    %v433 = vpop.f32.mrf.mxu0
    %v434 = vadd.f32 %v267, %v433
    %435 = vdwg.mxu0
    %436 = vmatprep.subr.mxu0 %v153
    %437 = vmatpush1.msra.mxu0 %v152
    %438 = vmatprep.subr.mxu0 %v147
    %439 = vmatpush1.msra.mxu0 %v146
    %440 = vmatprep.subr.mxu0 %v141
    %441 = vmatpush1.msra.mxu0 %v140
    %442 = vmatprep.subr.mxu0 %v135
    %443 = vmatpush1.msra.mxu0 %v134
    %444 = vmatprep.subr.mxu0 %v129
    %445 = vmatpush1.msra.mxu0 %v128
    %446 = vmatprep.subr.mxu0 %v123
    %447 = vmatpush1.msra.mxu0 %v122
    %448 = vmatprep.subr.mxu0 %v117
    %449 = vmatpush1.msra.mxu0 %v116
    %450 = vmatprep.subr.mxu0 %v111
    %451 = vmatpush1.msra.mxu0 %v110
    %452 = vmatprep.subr.mxu0 %v105
    %453 = vmatpush1.msra.mxu0 %v104
    %454 = vmatprep.subr.mxu0 %v99
    %455 = vmatpush1.msra.mxu0 %v98
    %456 = vmatprep.subr.mxu0 %v93
    %457 = vmatpush1.msra.mxu0 %v92
    %458 = vmatprep.subr.mxu0 %v87
    %459 = vmatpush1.msra.mxu0 %v86
    %460 = vmatprep.subr.mxu0 %v81
    %461 = vmatpush1.msra.mxu0 %v80
    %462 = vmatprep.subr.mxu0 %v75
    %463 = vmatpush1.msra.mxu0 %v74
    %464 = vmatprep.subr.mxu0 %v69
    %465 = vmatpush1.msra.mxu0 %v68
    %466 = vmatprep.subr.mxu0 %v63
    %467 = vmatpush1.msra.mxu0 %v62
    %468 = vmatprep.subr.mxu0 %v249
    %469 = vmatpush2.msra.mxu0 %v248
    %470 = vmatprep.subr.mxu0 %v243
    %471 = vmatpush2.msra.mxu0 %v242
    %472 = vmatprep.subr.mxu0 %v237
    %473 = vmatpush2.msra.mxu0 %v236
    %474 = vmatprep.subr.mxu0 %v231
    %475 = vmatpush2.msra.mxu0 %v230
    %476 = vmatprep.subr.mxu0 %v225
    %477 = vmatpush2.msra.mxu0 %v224
    %478 = vmatprep.subr.mxu0 %v219
    %479 = vmatpush2.msra.mxu0 %v218
    %480 = vmatprep.subr.mxu0 %v213
    %481 = vmatpush2.msra.mxu0 %v212
    %482 = vmatprep.subr.mxu0 %v207
    %483 = vmatpush2.msra.mxu0 %v206
    %484 = vmatprep.subr.mxu0 %v201
    %485 = vmatpush2.msra.mxu0 %v200
    %486 = vmatprep.subr.mxu0 %v195
    %487 = vmatpush2.msra.mxu0 %v194
    %488 = vmatprep.subr.mxu0 %v189
    %489 = vmatpush2.msra.mxu0 %v188
    %490 = vmatprep.subr.mxu0 %v183
    %491 = vmatpush2.msra.mxu0 %v182
    %492 = vmatprep.subr.mxu0 %v177
    %493 = vmatpush2.msra.mxu0 %v176
    %494 = vmatprep.subr.mxu0 %v171
    %495 = vmatpush2.msra.mxu0 %v170
    %496 = vmatprep.subr.mxu0 %v165
    %497 = vmatpush2.msra.mxu0 %v164
    %498 = vmatprep.subr.mxu0 %v159
    %499 = vmatpush2.msra.mxu0 %v158
    %500 = vmatprep.mubr.f32.mxu0 %v55
    %501 = vmatmul.mubr.f32.gmra.mxu0 %v54
    %v502 = vpop.f32.mrf.mxu0
    %v503 = vadd.f32 %v271, %v502
    %v504 = vpop.f32.mrf.mxu0
    %v505 = vadd.f32 %v275, %v504
    %506 = vmatprep.mubr.f32.mxu0 %v57
    %507 = vmatmul.mubr.f32.gmra.mxu0 %v56
    %v508 = vpop.f32.mrf.mxu0
    %v509 = vadd.f32 %v271, %v508
    %v510 = vpop.f32.mrf.mxu0
    %v511 = vadd.f32 %v275, %v510
    %512 = vdwg.mxu0
    %513 = vmatprep.subr.mxu0 0.0
    %514 = vmatpush1.xpose.msra.mxu0 0.0
    %515 = vmatprep.subr.mxu0 0.0
    %516 = vmatpush1.xpose.msra.mxu0 0.0
    %517 = vmatprep.subr.mxu0 0.0
    %518 = vmatpush1.xpose.msra.mxu0 0.0
    %519 = vmatprep.subr.mxu0 0.0
    %520 = vmatpush1.xpose.msra.mxu0 0.0
    %521 = vmatprep.subr.mxu0 0.0
    %522 = vmatpush1.xpose.msra.mxu0 0.0
    %523 = vmatprep.subr.mxu0 0.0
    %524 = vmatpush1.xpose.msra.mxu0 0.0
    %525 = vmatprep.subr.mxu0 0.0
    %526 = vmatpush1.xpose.msra.mxu0 0.0
    %527 = vmatprep.subr.mxu0 0.0
    %528 = vmatpush1.xpose.msra.mxu0 0.0
    %529 = vmatprep.subr.mxu0 0.0
    %530 = vmatpush1.xpose.msra.mxu0 0.0
    %531 = vmatprep.subr.mxu0 0.0
    %532 = vmatpush1.xpose.msra.mxu0 0.0
    %533 = vmatprep.subr.mxu0 0.0
    %534 = vmatpush1.xpose.msra.mxu0 0.0
    %535 = vmatprep.subr.mxu0 0.0
    %536 = vmatpush1.xpose.msra.mxu0 0.0
    %537 = vmatprep.subr.mxu0 0.0
    %538 = vmatpush1.xpose.msra.mxu0 0.0
    %539 = vmatprep.subr.mxu0 0.0
    %540 = vmatpush1.xpose.msra.mxu0 0.0
    %541 = vmatprep.subr.mxu0 0.0
    %542 = vmatpush1.xpose.msra.mxu0 0.0
    %543 = vmatprep.subr.mxu0 %v428
    %544 = vmatpush1.xpose.msra.mxu0 %v426
    %545 = vmatprep.subr.mxu0 0.0
    %546 = vmatpush2.xpose.msra.mxu0 0.0
    %547 = vmatprep.subr.mxu0 0.0
    %548 = vmatpush2.xpose.msra.mxu0 0.0
    %549 = vmatprep.subr.mxu0 0.0
    %550 = vmatpush2.xpose.msra.mxu0 0.0
    %551 = vmatprep.subr.mxu0 0.0
    %552 = vmatpush2.xpose.msra.mxu0 0.0
    %553 = vmatprep.subr.mxu0 0.0
    %554 = vmatpush2.xpose.msra.mxu0 0.0
    %555 = vmatprep.subr.mxu0 0.0
    %556 = vmatpush2.xpose.msra.mxu0 0.0
    %557 = vmatprep.subr.mxu0 0.0
    %558 = vmatpush2.xpose.msra.mxu0 0.0
    %559 = vmatprep.subr.mxu0 0.0
    %560 = vmatpush2.xpose.msra.mxu0 0.0
    %561 = vmatprep.subr.mxu0 0.0
    %562 = vmatpush2.xpose.msra.mxu0 0.0
    %563 = vmatprep.subr.mxu0 0.0
    %564 = vmatpush2.xpose.msra.mxu0 0.0
    %565 = vmatprep.subr.mxu0 0.0
    %566 = vmatpush2.xpose.msra.mxu0 0.0
    %567 = vmatprep.subr.mxu0 0.0
    %568 = vmatpush2.xpose.msra.mxu0 0.0
    %569 = vmatprep.subr.mxu0 0.0
    %570 = vmatpush2.xpose.msra.mxu0 0.0
    %571 = vmatprep.subr.mxu0 0.0
    %572 = vmatpush2.xpose.msra.mxu0 0.0
    %573 = vmatprep.subr.mxu0 0.0
    %574 = vmatpush2.xpose.msra.mxu0 0.0
    %575 = vmatprep.subr.mxu0 0.0
    %576 = vmatpush2.xpose.msra.mxu0 0.0
    %577 = vmatprep.mubr.f32.mxu0 %v351
    %578 = vmatmul.mubr.f32.gmra.mxu0 %v349
    %v579 = vpop.f32.mrf.mxu0
    %v580 = vadd.f32 0.0, %v579
    %v581 = vpop.f32.mrf.mxu0
    %582 = vdwg.mxu0
    %583 = vmatprep.subr.mxu0 0.0
    %584 = vmatpush1.xpose.msra.mxu0 0.0
    %585 = vmatprep.subr.mxu0 0.0
    %586 = vmatpush1.xpose.msra.mxu0 0.0
    %587 = vmatprep.subr.mxu0 0.0
    %588 = vmatpush1.xpose.msra.mxu0 0.0
    %589 = vmatprep.subr.mxu0 0.0
    %590 = vmatpush1.xpose.msra.mxu0 0.0
    %591 = vmatprep.subr.mxu0 0.0
    %592 = vmatpush1.xpose.msra.mxu0 0.0
    %593 = vmatprep.subr.mxu0 0.0
    %594 = vmatpush1.xpose.msra.mxu0 0.0
    %595 = vmatprep.subr.mxu0 0.0
    %596 = vmatpush1.xpose.msra.mxu0 0.0
    %597 = vmatprep.subr.mxu0 0.0
    %598 = vmatpush1.xpose.msra.mxu0 0.0
    %599 = vmatprep.subr.mxu0 0.0
    %600 = vmatpush1.xpose.msra.mxu0 0.0
    %601 = vmatprep.subr.mxu0 0.0
    %602 = vmatpush1.xpose.msra.mxu0 0.0
    %603 = vmatprep.subr.mxu0 0.0
    %604 = vmatpush1.xpose.msra.mxu0 0.0
    %605 = vmatprep.subr.mxu0 0.0
    %606 = vmatpush1.xpose.msra.mxu0 0.0
    %607 = vmatprep.subr.mxu0 0.0
    %608 = vmatpush1.xpose.msra.mxu0 0.0
    %609 = vmatprep.subr.mxu0 0.0
    %610 = vmatpush1.xpose.msra.mxu0 0.0
    %611 = vmatprep.subr.mxu0 0.0
    %612 = vmatpush1.xpose.msra.mxu0 0.0
    %613 = vmatprep.subr.mxu0 %v434
    %614 = vmatpush1.xpose.msra.mxu0 %v432
    %615 = vmatprep.subr.mxu0 0.0
    %616 = vmatpush2.xpose.msra.mxu0 0.0
    %617 = vmatprep.subr.mxu0 0.0
    %618 = vmatpush2.xpose.msra.mxu0 0.0
    %619 = vmatprep.subr.mxu0 0.0
    %620 = vmatpush2.xpose.msra.mxu0 0.0
    %621 = vmatprep.subr.mxu0 0.0
    %622 = vmatpush2.xpose.msra.mxu0 0.0
    %623 = vmatprep.subr.mxu0 0.0
    %624 = vmatpush2.xpose.msra.mxu0 0.0
    %625 = vmatprep.subr.mxu0 0.0
    %626 = vmatpush2.xpose.msra.mxu0 0.0
    %627 = vmatprep.subr.mxu0 0.0
    %628 = vmatpush2.xpose.msra.mxu0 0.0
    %629 = vmatprep.subr.mxu0 0.0
    %630 = vmatpush2.xpose.msra.mxu0 0.0
    %631 = vmatprep.subr.mxu0 0.0
    %632 = vmatpush2.xpose.msra.mxu0 0.0
    %633 = vmatprep.subr.mxu0 0.0
    %634 = vmatpush2.xpose.msra.mxu0 0.0
    %635 = vmatprep.subr.mxu0 0.0
    %636 = vmatpush2.xpose.msra.mxu0 0.0
    %637 = vmatprep.subr.mxu0 0.0
    %638 = vmatpush2.xpose.msra.mxu0 0.0
    %639 = vmatprep.subr.mxu0 0.0
    %640 = vmatpush2.xpose.msra.mxu0 0.0
    %641 = vmatprep.subr.mxu0 0.0
    %642 = vmatpush2.xpose.msra.mxu0 0.0
    %643 = vmatprep.subr.mxu0 0.0
    %644 = vmatpush2.xpose.msra.mxu0 0.0
    %645 = vmatprep.subr.mxu0 0.0
    %646 = vmatpush2.xpose.msra.mxu0 0.0
    %647 = vmatprep.mubr.f32.mxu0 %v357
    %648 = vmatmul.mubr.f32.gmra.mxu0 %v355
    %v649 = vpop.f32.mrf.mxu0
    %v650 = vadd.f32 0.0, %v649
    %v651 = vpop.f32.mrf.mxu0
    %652 = vdwg.mxu0
    %vm653 = vcmask 64512
    %v654 = vsel %vm653, %v580, -inf
    %655 = vmax.xlane.f32.xlu0 %v654
    %v656 = vpop.xlane.xlu0 %655
    %v657 = vsel %vm653, %v650, -inf
    %658 = vmax.xlane.f32.xlu0 %v657
    %v659 = vpop.xlane.xlu0 %658
    %v660 = vsub.f32 %v580, %v656
    %v661 = vsub.f32 %v650, %v659
    %v662 = vmul.f32 %v660, 1.442695
    %v663 = vpow.pop %v662
    %v664 = vmul.f32 %v661, 1.442695
    %v665 = vpow.pop %v664
    %v666 = vsel %vm653, %v663, 0.0
    %667 = vadd.xlane.f32.xlu0 %v666
    %v668 = vpop.xlane.xlu0 %667
    %v669 = vsel %vm653, %v665, 0.0
    %670 = vadd.xlane.f32.xlu0 %v669
    %v671 = vpop.xlane.xlu0 %670
    %v672 = vmul.f32 %v668, 8.0
    %v673 = vmul.f32 %v671, 8.0
    %v674 = vrcp.pop %v672
    %v675 = vmul.f32 1.0, %v674
    %v676 = vrcp.pop %v673
    %v677 = vmul.f32 1.0, %v676
    %678 = vxpose.xlu0.b32.start [1/16] %v675, 128
    %679 = vxpose.xlu0.b32.cont [2/16] 0.0, 128
    %680 = vxpose.xlu0.b32.cont [3/16] 0.0, 128
    %681 = vxpose.xlu0.b32.cont [4/16] 0.0, 128
    %682 = vxpose.xlu0.b32.cont [5/16] 0.0, 128
    %683 = vxpose.xlu0.b32.cont [6/16] 0.0, 128
    %684 = vxpose.xlu0.b32.cont [7/16] 0.0, 128
    %685 = vxpose.xlu0.b32.cont [8/16] 0.0, 128
    %686 = vxpose.xlu0.b32.cont [9/16] 0.0, 128
    %687 = vxpose.xlu0.b32.cont [10/16] 0.0, 128
    %688 = vxpose.xlu0.b32.cont [11/16] 0.0, 128
    %689 = vxpose.xlu0.b32.cont [12/16] 0.0, 128
    %690 = vxpose.xlu0.b32.cont [13/16] 0.0, 128
    %691 = vxpose.xlu0.b32.cont [14/16] 0.0, 128
    %692 = vxpose.xlu0.b32.cont [15/16] 0.0, 128
    %693 = vxpose.xlu0.b32.end [16/16] 0.0, 128
    %v694 = vpop.trf.xlu0
    %v695 = vpop.trf.xlu0
    %v696 = vpop.trf.xlu0
    %v697 = vpop.trf.xlu0
    %v698 = vpop.trf.xlu0
    %v699 = vpop.trf.xlu0
    %v700 = vpop.trf.xlu0
    %v701 = vpop.trf.xlu0
    %v702 = vpop.trf.xlu0
    %v703 = vpop.trf.xlu0
    %v704 = vpop.trf.xlu0
    %v705 = vpop.trf.xlu0
    %v706 = vpop.trf.xlu0
    %v707 = vpop.trf.xlu0
    %v708 = vpop.trf.xlu0
    %v709 = vpop.trf.xlu0
    %v711 = vsel %vm653, %v694, 0
    %713 = vmatprep.subr.mxu0 0.0
    %714 = vmatpush1.msra.mxu0 0.0
    %715 = vmatprep.subr.mxu0 0.0
    %716 = vmatpush1.msra.mxu0 0.0
    %717 = vmatprep.subr.mxu0 0.0
    %718 = vmatpush1.msra.mxu0 0.0
    %719 = vmatprep.subr.mxu0 0.0
    %720 = vmatpush1.msra.mxu0 0.0
    %721 = vmatprep.subr.mxu0 0.0
    %722 = vmatpush1.msra.mxu0 0.0
    %723 = vmatprep.subr.mxu0 0.0
    %724 = vmatpush1.msra.mxu0 0.0
    %725 = vmatprep.subr.mxu0 0.0
    %726 = vmatpush1.msra.mxu0 0.0
    %727 = vmatprep.subr.mxu0 0.0
    %728 = vmatpush1.msra.mxu0 0.0
    %729 = vmatprep.subr.mxu0 0.0
    %730 = vmatpush1.msra.mxu0 0.0
    %731 = vmatprep.subr.mxu0 0.0
    %732 = vmatpush1.msra.mxu0 0.0
    %733 = vmatprep.subr.mxu0 0.0
    %734 = vmatpush1.msra.mxu0 0.0
    %735 = vmatprep.subr.mxu0 0.0
    %736 = vmatpush1.msra.mxu0 0.0
    %737 = vmatprep.subr.mxu0 0.0
    %738 = vmatpush1.msra.mxu0 0.0
    %739 = vmatprep.subr.mxu0 0.0
    %740 = vmatpush1.msra.mxu0 0.0
    %741 = vmatprep.subr.mxu0 0.0
    %742 = vmatpush1.msra.mxu0 0.0
    %743 = vmatprep.subr.mxu0 0.0
    %744 = vmatpush1.msra.mxu0 %v663
    %745 = vmatprep.subr.mxu0 0.0
    %746 = vmatpush2.msra.mxu0 0.0
    %747 = vmatprep.subr.mxu0 0.0
    %748 = vmatpush2.msra.mxu0 0.0
    %749 = vmatprep.subr.mxu0 0.0
    %750 = vmatpush2.msra.mxu0 0.0
    %751 = vmatprep.subr.mxu0 0.0
    %752 = vmatpush2.msra.mxu0 0.0
    %753 = vmatprep.subr.mxu0 0.0
    %754 = vmatpush2.msra.mxu0 0.0
    %755 = vmatprep.subr.mxu0 0.0
    %756 = vmatpush2.msra.mxu0 0.0
    %757 = vmatprep.subr.mxu0 0.0
    %758 = vmatpush2.msra.mxu0 0.0
    %759 = vmatprep.subr.mxu0 0.0
    %760 = vmatpush2.msra.mxu0 0.0
    %761 = vmatprep.subr.mxu0 0.0
    %762 = vmatpush2.msra.mxu0 0.0
    %763 = vmatprep.subr.mxu0 0.0
    %764 = vmatpush2.msra.mxu0 0.0
    %765 = vmatprep.subr.mxu0 0.0
    %766 = vmatpush2.msra.mxu0 0.0
    %767 = vmatprep.subr.mxu0 0.0
    %768 = vmatpush2.msra.mxu0 0.0
    %769 = vmatprep.subr.mxu0 0.0
    %770 = vmatpush2.msra.mxu0 0.0
    %771 = vmatprep.subr.mxu0 0.0
    %772 = vmatpush2.msra.mxu0 0.0
    %773 = vmatprep.subr.mxu0 0.0
    %774 = vmatpush2.msra.mxu0 0.0
    %775 = vmatprep.subr.mxu0 0.0
    %776 = vmatpush2.msra.mxu0 0.0
    %777 = vmatprep.mubr.f32.mxu0 0.0
    %778 = vmatmul.mubr.f32.gmra.mxu0 %v711
    %v779 = vpop.f32.mrf.mxu0
    %v780 = vadd.f32 0.0, %v779
    %v781 = vpop.f32.mrf.mxu0
    %782 = vdwg.mxu0
    %783 = vxpose.xlu0.b32.start [1/16] %v677, 128
    %784 = vxpose.xlu0.b32.cont [2/16] 0.0, 128
    %785 = vxpose.xlu0.b32.cont [3/16] 0.0, 128
    %786 = vxpose.xlu0.b32.cont [4/16] 0.0, 128
    %787 = vxpose.xlu0.b32.cont [5/16] 0.0, 128
    %788 = vxpose.xlu0.b32.cont [6/16] 0.0, 128
    %789 = vxpose.xlu0.b32.cont [7/16] 0.0, 128
    %790 = vxpose.xlu0.b32.cont [8/16] 0.0, 128
    %791 = vxpose.xlu0.b32.cont [9/16] 0.0, 128
    %792 = vxpose.xlu0.b32.cont [10/16] 0.0, 128
    %793 = vxpose.xlu0.b32.cont [11/16] 0.0, 128
    %794 = vxpose.xlu0.b32.cont [12/16] 0.0, 128
    %795 = vxpose.xlu0.b32.cont [13/16] 0.0, 128
    %796 = vxpose.xlu0.b32.cont [14/16] 0.0, 128
    %797 = vxpose.xlu0.b32.cont [15/16] 0.0, 128
    %798 = vxpose.xlu0.b32.end [16/16] 0.0, 128
    %v799 = vpop.trf.xlu0
    %v800 = vpop.trf.xlu0
    %v801 = vpop.trf.xlu0
    %v802 = vpop.trf.xlu0
    %v803 = vpop.trf.xlu0
    %v804 = vpop.trf.xlu0
    %v805 = vpop.trf.xlu0
    %v806 = vpop.trf.xlu0
    %v807 = vpop.trf.xlu0
    %v808 = vpop.trf.xlu0
    %v809 = vpop.trf.xlu0
    %v810 = vpop.trf.xlu0
    %v811 = vpop.trf.xlu0
    %v812 = vpop.trf.xlu0
    %v813 = vpop.trf.xlu0
    %v814 = vpop.trf.xlu0
    %v816 = vsel %vm653, %v799, 0
    %818 = vmatprep.subr.mxu0 0.0
    %819 = vmatpush1.msra.mxu0 0.0
    %820 = vmatprep.subr.mxu0 0.0
    %821 = vmatpush1.msra.mxu0 0.0
    %822 = vmatprep.subr.mxu0 0.0
    %823 = vmatpush1.msra.mxu0 0.0
    %824 = vmatprep.subr.mxu0 0.0
    %825 = vmatpush1.msra.mxu0 0.0
    %826 = vmatprep.subr.mxu0 0.0
    %827 = vmatpush1.msra.mxu0 0.0
    %828 = vmatprep.subr.mxu0 0.0
    %829 = vmatpush1.msra.mxu0 0.0
    %830 = vmatprep.subr.mxu0 0.0
    %831 = vmatpush1.msra.mxu0 0.0
    %832 = vmatprep.subr.mxu0 0.0
    %833 = vmatpush1.msra.mxu0 0.0
    %834 = vmatprep.subr.mxu0 0.0
    %835 = vmatpush1.msra.mxu0 0.0
    %836 = vmatprep.subr.mxu0 0.0
    %837 = vmatpush1.msra.mxu0 0.0
    %838 = vmatprep.subr.mxu0 0.0
    %839 = vmatpush1.msra.mxu0 0.0
    %840 = vmatprep.subr.mxu0 0.0
    %841 = vmatpush1.msra.mxu0 0.0
    %842 = vmatprep.subr.mxu0 0.0
    %843 = vmatpush1.msra.mxu0 0.0
    %844 = vmatprep.subr.mxu0 0.0
    %845 = vmatpush1.msra.mxu0 0.0
    %846 = vmatprep.subr.mxu0 0.0
    %847 = vmatpush1.msra.mxu0 0.0
    %848 = vmatprep.subr.mxu0 0.0
    %849 = vmatpush1.msra.mxu0 %v665
    %850 = vmatprep.subr.mxu0 0.0
    %851 = vmatpush2.msra.mxu0 0.0
    %852 = vmatprep.subr.mxu0 0.0
    %853 = vmatpush2.msra.mxu0 0.0
    %854 = vmatprep.subr.mxu0 0.0
    %855 = vmatpush2.msra.mxu0 0.0
    %856 = vmatprep.subr.mxu0 0.0
    %857 = vmatpush2.msra.mxu0 0.0
    %858 = vmatprep.subr.mxu0 0.0
    %859 = vmatpush2.msra.mxu0 0.0
    %860 = vmatprep.subr.mxu0 0.0
    %861 = vmatpush2.msra.mxu0 0.0
    %862 = vmatprep.subr.mxu0 0.0
    %863 = vmatpush2.msra.mxu0 0.0
    %864 = vmatprep.subr.mxu0 0.0
    %865 = vmatpush2.msra.mxu0 0.0
    %866 = vmatprep.subr.mxu0 0.0
    %867 = vmatpush2.msra.mxu0 0.0
    %868 = vmatprep.subr.mxu0 0.0
    %869 = vmatpush2.msra.mxu0 0.0
    %870 = vmatprep.subr.mxu0 0.0
    %871 = vmatpush2.msra.mxu0 0.0
    %872 = vmatprep.subr.mxu0 0.0
    %873 = vmatpush2.msra.mxu0 0.0
    %874 = vmatprep.subr.mxu0 0.0
    %875 = vmatpush2.msra.mxu0 0.0
    %876 = vmatprep.subr.mxu0 0.0
    %877 = vmatpush2.msra.mxu0 0.0
    %878 = vmatprep.subr.mxu0 0.0
    %879 = vmatpush2.msra.mxu0 0.0
    %880 = vmatprep.subr.mxu0 0.0
    %881 = vmatpush2.msra.mxu0 0.0
    %882 = vmatprep.mubr.f32.mxu0 0.0
    %883 = vmatmul.mubr.f32.gmra.mxu0 %v816
    %v884 = vpop.f32.mrf.mxu0
    %v885 = vadd.f32 0.0, %v884
    %v886 = vpop.f32.mrf.mxu0
    %887 = vdwg.mxu0
    %v889 = vsel %vm653, %v780, 0
    %891 = vmatprep.subr.mxu0 0.0
    %892 = vmatpush1.msra.mxu0 0.0
    %893 = vmatprep.subr.mxu0 0.0
    %894 = vmatpush1.msra.mxu0 0.0
    %895 = vmatprep.subr.mxu0 0.0
    %896 = vmatpush1.msra.mxu0 0.0
    %897 = vmatprep.subr.mxu0 0.0
    %898 = vmatpush1.msra.mxu0 0.0
    %899 = vmatprep.subr.mxu0 0.0
    %900 = vmatpush1.msra.mxu0 0.0
    %901 = vmatprep.subr.mxu0 0.0
    %902 = vmatpush1.msra.mxu0 0.0
    %903 = vmatprep.subr.mxu0 0.0
    %904 = vmatpush1.msra.mxu0 0.0
    %905 = vmatprep.subr.mxu0 0.0
    %906 = vmatpush1.msra.mxu0 0.0
    %907 = vmatprep.subr.mxu0 0.0
    %908 = vmatpush1.msra.mxu0 0.0
    %909 = vmatprep.subr.mxu0 0.0
    %910 = vmatpush1.msra.mxu0 0.0
    %911 = vmatprep.subr.mxu0 0.0
    %912 = vmatpush1.msra.mxu0 0.0
    %913 = vmatprep.subr.mxu0 0.0
    %914 = vmatpush1.msra.mxu0 0.0
    %915 = vmatprep.subr.mxu0 0.0
    %916 = vmatpush1.msra.mxu0 0.0
    %917 = vmatprep.subr.mxu0 0.0
    %918 = vmatpush1.msra.mxu0 0.0
    %919 = vmatprep.subr.mxu0 0.0
    %920 = vmatpush1.msra.mxu0 0.0
    %921 = vmatprep.subr.mxu0 %v505
    %922 = vmatpush1.msra.mxu0 %v503
    %923 = vmatprep.subr.mxu0 0.0
    %924 = vmatpush2.msra.mxu0 0.0
    %925 = vmatprep.subr.mxu0 0.0
    %926 = vmatpush2.msra.mxu0 0.0
    %927 = vmatprep.subr.mxu0 0.0
    %928 = vmatpush2.msra.mxu0 0.0
    %929 = vmatprep.subr.mxu0 0.0
    %930 = vmatpush2.msra.mxu0 0.0
    %931 = vmatprep.subr.mxu0 0.0
    %932 = vmatpush2.msra.mxu0 0.0
    %933 = vmatprep.subr.mxu0 0.0
    %934 = vmatpush2.msra.mxu0 0.0
    %935 = vmatprep.subr.mxu0 0.0
    %936 = vmatpush2.msra.mxu0 0.0
    %937 = vmatprep.subr.mxu0 0.0
    %938 = vmatpush2.msra.mxu0 0.0
    %939 = vmatprep.subr.mxu0 0.0
    %940 = vmatpush2.msra.mxu0 0.0
    %941 = vmatprep.subr.mxu0 0.0
    %942 = vmatpush2.msra.mxu0 0.0
    %943 = vmatprep.subr.mxu0 0.0
    %944 = vmatpush2.msra.mxu0 0.0
    %945 = vmatprep.subr.mxu0 0.0
    %946 = vmatpush2.msra.mxu0 0.0
    %947 = vmatprep.subr.mxu0 0.0
    %948 = vmatpush2.msra.mxu0 0.0
    %949 = vmatprep.subr.mxu0 0.0
    %950 = vmatpush2.msra.mxu0 0.0
    %951 = vmatprep.subr.mxu0 0.0
    %952 = vmatpush2.msra.mxu0 0.0
    %953 = vmatprep.subr.mxu0 0.0
    %954 = vmatpush2.msra.mxu0 0.0
    %955 = vmatprep.mubr.f32.mxu0 0.0
    %956 = vmatmul.mubr.f32.gmra.mxu0 %v889
    %v957 = vpop.f32.mrf.mxu0
    %v958 = vadd.f32 0.0, %v957
    %v959 = vpop.f32.mrf.mxu0
    %v960 = vadd.f32 0.0, %v959
    %961 = vdwg.mxu0
    %v963 = vsel %vm653, %v885, 0
    %965 = vmatprep.subr.mxu0 0.0
    %966 = vmatpush1.msra.mxu0 0.0
    %967 = vmatprep.subr.mxu0 0.0
    %968 = vmatpush1.msra.mxu0 0.0
    %969 = vmatprep.subr.mxu0 0.0
    %970 = vmatpush1.msra.mxu0 0.0
    %971 = vmatprep.subr.mxu0 0.0
    %972 = vmatpush1.msra.mxu0 0.0
    %973 = vmatprep.subr.mxu0 0.0
    %974 = vmatpush1.msra.mxu0 0.0
    %975 = vmatprep.subr.mxu0 0.0
    %976 = vmatpush1.msra.mxu0 0.0
    %977 = vmatprep.subr.mxu0 0.0
    %978 = vmatpush1.msra.mxu0 0.0
    %979 = vmatprep.subr.mxu0 0.0
    %980 = vmatpush1.msra.mxu0 0.0
    %981 = vmatprep.subr.mxu0 0.0
    %982 = vmatpush1.msra.mxu0 0.0
    %983 = vmatprep.subr.mxu0 0.0
    %984 = vmatpush1.msra.mxu0 0.0
    %985 = vmatprep.subr.mxu0 0.0
    %986 = vmatpush1.msra.mxu0 0.0
    %987 = vmatprep.subr.mxu0 0.0
    %988 = vmatpush1.msra.mxu0 0.0
    %989 = vmatprep.subr.mxu0 0.0
    %990 = vmatpush1.msra.mxu0 0.0
    %991 = vmatprep.subr.mxu0 0.0
    %992 = vmatpush1.msra.mxu0 0.0
    %993 = vmatprep.subr.mxu0 0.0
    %994 = vmatpush1.msra.mxu0 0.0
    %995 = vmatprep.subr.mxu0 %v511
    %996 = vmatpush1.msra.mxu0 %v509
    %997 = vmatprep.subr.mxu0 0.0
    %998 = vmatpush2.msra.mxu0 0.0
    %999 = vmatprep.subr.mxu0 0.0
    %1000 = vmatpush2.msra.mxu0 0.0
    %1001 = vmatprep.subr.mxu0 0.0
    %1002 = vmatpush2.msra.mxu0 0.0
    %1003 = vmatprep.subr.mxu0 0.0
    %1004 = vmatpush2.msra.mxu0 0.0
    %1005 = vmatprep.subr.mxu0 0.0
    %1006 = vmatpush2.msra.mxu0 0.0
    %1007 = vmatprep.subr.mxu0 0.0
    %1008 = vmatpush2.msra.mxu0 0.0
    %1009 = vmatprep.subr.mxu0 0.0
    %1010 = vmatpush2.msra.mxu0 0.0
    %1011 = vmatprep.subr.mxu0 0.0
    %1012 = vmatpush2.msra.mxu0 0.0
    %1013 = vmatprep.subr.mxu0 0.0
    %1014 = vmatpush2.msra.mxu0 0.0
    %1015 = vmatprep.subr.mxu0 0.0
    %1016 = vmatpush2.msra.mxu0 0.0
    %1017 = vmatprep.subr.mxu0 0.0
    %1018 = vmatpush2.msra.mxu0 0.0
    %1019 = vmatprep.subr.mxu0 0.0
    %1020 = vmatpush2.msra.mxu0 0.0
    %1021 = vmatprep.subr.mxu0 0.0
    %1022 = vmatpush2.msra.mxu0 0.0
    %1023 = vmatprep.subr.mxu0 0.0
    %1024 = vmatpush2.msra.mxu0 0.0
    %1025 = vmatprep.subr.mxu0 0.0
    %1026 = vmatpush2.msra.mxu0 0.0
    %1027 = vmatprep.subr.mxu0 0.0
    %1028 = vmatpush2.msra.mxu0 0.0
    %1029 = vmatprep.mubr.f32.mxu0 0.0
    %1030 = vmatmul.mubr.f32.gmra.mxu0 %v963
    %v1031 = vpop.f32.mrf.mxu0
    %v1032 = vadd.f32 0.0, %v1031
    %v1033 = vpop.f32.mrf.mxu0
    %v1034 = vadd.f32 0.0, %v1033
    %1035 = vdwg.mxu0
    %v1040 = vcombine.low %v958, %v960
    %v1042 = vunpack.c.l.s4 1983009808
    %v1043 = vunpack.c.0.s8 %v1042
    %v1044 = vlaneseq
    %v1045 = vshrl.u32 %v1044, 7
    %v1046 = vsub.s32 %v1043, %v1045
    %v1047 = vrot.slane %v1040, %v1046
    %v1048 = vcombine.low %v1032, %v1034
    %v1050 = vunpack.c.l.s4 1983009808
    %v1051 = vunpack.c.0.s8 %v1050
    %v1052 = vlaneseq
    %v1053 = vshrl.u32 %v1052, 7
    %v1054 = vsub.s32 %v1051, %v1053
    %v1055 = vrot.slane %v1048, %v1054
    %vm1056 = vcmask 1044484
    %v1057 = vsel %vm1056, %v1047, %v1047
    %vm1058 = vcmask 1046534
    %v1059 = vsel %vm1058, %v1047, %v1057
    %v1060 = vrot.slane %v1055, 7
    %vm1061 = vcmask 1041409
    %v1062 = vsel %vm1061, %v1060, %v1059
    %vm1063 = vcmask 1043459
    %v1064 = vsel %vm1063, %v1060, %v1062
    %vm1065 = vcmask 1045509
    %v1066 = vsel %vm1065, %v1060, %v1064
    %vm1067 = vcmask 1047559
    %v1068 = vsel %vm1067, %v1060, %v1066
    %1070 = vst [vmem:[#allocation8] sm:$0xf] %v1068
    // Predicated region
    $region26: #{tpu_custom_call.1} parent=1 // pred_check
      _
    $region27: #{tpu_custom_call.1} parent=1 // pred_check_branch
      %1072 = sbr.rel (0) target = $region29
    $region28: #{tpu_custom_call.1} parent=1 // pred_region
      %s1074 = ssub.s32 64, 64
      %1075 = vsyncadd [#allocation4], %s1074
      %s1077 = sshll.u32 [#allocation8], 4
      %s1078 = int_to_ptr.vmem [resolvable:$true] %s1077
      %1080 = dma.vmem_to_hbm [thread:$0]  %s1078, 64, %s3, [#allocation4]
    $region29: #{tpu_custom_call.1} parent=1 // pred_fallthru
      _
    // Predicated region
    $region30: #{tpu_custom_call.1} parent=1 // pred_check
      _
    $region31: #{tpu_custom_call.1} parent=1 // pred_check_branch
      %1082 = sbr.rel (0) target = $region33
    $region32: #{tpu_custom_call.1} parent=1 // pred_region
      %1083 = dma.done [#allocation4], 64
    $region33: #{tpu_custom_call.1} parent=1 // pred_fallthru
      _
    %1084 = vsyncpa [#allocation3], 1
    %1085 = vsyncpa [#allocation6], 1
    %1086 = vsyncpa [#allocation4], 1

// kernel: tpu_custom_call.1
$region0: #{tpu_custom_call.1}
  #allocation0 [shape = 'u32[]', space=smem, size = 0x4, offset = 0x4, fixed_abs, tag = 'smem constant byte address 0x4 - core index']
  #allocation1 [shape = 'u32[144,128]{1,0:T(1,128)}', space=vmem, size = 0x12000, scoped, tag = 'internal scratch']
  %s0 = inlined_call_operand.hbm [shape: f32[2,8,256], index: 0, kind: input, shape index: {}]
  %s1 = inlined_call_operand.hbm [shape: f32[256,768], index: 1, kind: input, shape index: {}]
  %s2 = inlined_call_operand.hbm [shape: f32[1,768], index: 2, kind: input, shape index: {}]
  %s3 = inlined_call_operand.hbm [shape: f32[2,256], index: 3, kind: output, shape index: {}]
  %s4 = sld [smem:[#allocation0]]
  $region34: #{tpu_custom_call.1} parent=0
    _
  %s6 = ssub.s32 1, %s4
  %s7 = scalar_select 0, %s6, %s4
  $region1: #{tpu_custom_call.1} parent=0
    #allocation2 [shape = 'u8[16384]{0}', space=vmem, size = 0x4000, scoped, tag = 'input window, operand 0, single buffered']
    #allocation3 [shape = 's32[1]{0}', space=sflag, size = 0x4, scoped, tag = 'scoped memory for tpu_custom_call.1']
    #allocation4 [shape = 's32[1]{0}', space=sflag, size = 0x4, scoped, tag = 'scoped memory for tpu_custom_call.1']
    #allocation5 [shape = 'u8[786432]{0}', space=vmem, size = 0xc0000, scoped, tag = 'input window, operand 1, single buffered']
    #allocation6 [shape = 's32[1]{0}', space=sflag, size = 0x4, scoped, tag = 'scoped memory for tpu_custom_call.1']
    #allocation7 [shape = 'u8[3072]{0}', space=vmem, size = 0xc00, scoped, tag = 'input window, operand 2, single buffered']
    #allocation8 [shape = 'u8[2048]{0}', space=vmem, size = 0x800, scoped, tag = 'output window, operand 0, single buffered']
    %8 = vsyncpa [#allocation3], 0
    %9 = vsyncpa [#allocation6], 0
    %10 = vsyncpa [#allocation4], 0
    // Predicated region
    $region2: #{tpu_custom_call.1} parent=1 // pred_check
      _
    $region3: #{tpu_custom_call.1} parent=1 // pred_check_branch
      %12 = sbr.rel (0) target = $region5
    $region4: #{tpu_custom_call.1} parent=1 // pred_region
      %s14 = ssub.s32 512, 512
      %15 = vsyncadd [#allocation3], %s14
      %s16 = sshll.u32 [#allocation2], 4
      %s17 = int_to_ptr.vmem [resolvable:$true] %s16
      %22 = dma.hbm_to_vmem [thread:$0]  %s0, 512, %s17, [#allocation3], 256, 256, 16
    $region5: #{tpu_custom_call.1} parent=1 // pred_fallthru
      _
    // Predicated region
    $region6: #{tpu_custom_call.1} parent=1 // pred_check
      _
    $region7: #{tpu_custom_call.1} parent=1 // pred_check_branch
      %24 = sbr.rel (0) target = $region9
    $region8: #{tpu_custom_call.1} parent=1 // pred_region
      %s26 = ssub.s32 24576, 24576
      %27 = vsyncadd [#allocation6], %s26
      %s28 = sshll.u32 [#allocation5], 4
      %s29 = int_to_ptr.vmem [resolvable:$true] %s28
      %34 = dma.hbm_to_vmem [thread:$0]  %s1, 24576, %s29, [#allocation6], 768, 768, 48
    $region9: #{tpu_custom_call.1} parent=1 // pred_fallthru
      _
    // Predicated region
    $region10: #{tpu_custom_call.1} parent=1 // pred_check
      _
    $region11: #{tpu_custom_call.1} parent=1 // pred_check_branch
      %36 = sbr.rel (0) target = $region13
    $region12: #{tpu_custom_call.1} parent=1 // pred_region
      %s38 = ssub.s32 96, 96
      %39 = vsyncadd [#allocation6], %s38
      %s41 = sshll.u32 [#allocation7], 4
      %s42 = int_to_ptr.vmem [resolvable:$true] %s41
      %44 = dma.hbm_to_vmem [thread:$0]  %s2, 96, %s42, [#allocation6]
    $region13: #{tpu_custom_call.1} parent=1 // pred_fallthru
      _
    // Predicated region
    $region14: #{tpu_custom_call.1} parent=1 // pred_check
      _
    $region15: #{tpu_custom_call.1} parent=1 // pred_check_branch
      %46 = sbr.rel (0) target = $region17
    $region16: #{tpu_custom_call.1} parent=1 // pred_region
      %47 = dma.done [#allocation3], 512
    $region17: #{tpu_custom_call.1} parent=1 // pred_fallthru
      _
    // Predicated region
    $region18: #{tpu_custom_call.1} parent=1 // pred_check
      _
    $region19: #{tpu_custom_call.1} parent=1 // pred_check_branch
      %49 = sbr.rel (0) target = $region21
    $region20: #{tpu_custom_call.1} parent=1 // pred_region
      %50 = dma.done [#allocation6], 24576
    $region21: #{tpu_custom_call.1} parent=1 // pred_fallthru
      _
    // Predicated region
    $region22: #{tpu_custom_call.1} parent=1 // pred_check
      _
    $region23: #{tpu_custom_call.1} parent=1 // pred_check_branch
      %52 = sbr.rel (0) target = $region25
    $region24: #{tpu_custom_call.1} parent=1 // pred_region
      %53 = dma.done [#allocation6], 96
    $region25: #{tpu_custom_call.1} parent=1 // pred_fallthru
      _
    %v54 = vld [vmem:[#allocation2] sm:$0xff]
    %v55 = vld [vmem:[#allocation2 + $0x8] sm:$0xff]
    %v56 = vld [vmem:[#allocation2 + $0x10] sm:$0xff]
    %v57 = vld [vmem:[#allocation2 + $0x18] sm:$0xff]
    %v58 = vld [vmem:[#allocation5] sm:$0xff]
    %v59 = vld [vmem:[#allocation5 + $0x8] sm:$0xff]
    %v60 = vld [vmem:[#allocation5 + $0x10] sm:$0xff]
    %v61 = vld [vmem:[#allocation5 + $0x18] sm:$0xff]
    %v62 = vld [vmem:[#allocation5 + $0x20] sm:$0xff]
    %v63 = vld [vmem:[#allocation5 + $0x28] sm:$0xff]
    %v64 = vld [vmem:[#allocation5 + $0x30] sm:$0xff]
    %v65 = vld [vmem:[#allocation5 + $0x38] sm:$0xff]
    %v66 = vld [vmem:[#allocation5 + $0x40] sm:$0xff]
    %v67 = vld [vmem:[#allocation5 + $0x48] sm:$0xff]
    %v68 = vld [vmem:[#allocation5 + $0x50] sm:$0xff]
    %v69 = vld [vmem:[#allocation5 + $0x58] sm:$0xff]
    %v70 = vld [vmem:[#allocation5 + $0x60] sm:$0xff]
    %v71 = vld [vmem:[#allocation5 + $0x68] sm:$0xff]
    %v72 = vld [vmem:[#allocation5 + $0x70] sm:$0xff]
    %v73 = vld [vmem:[#allocation5 + $0x78] sm:$0xff]
    %v74 = vld [vmem:[#allocation5 + $0x80] sm:$0xff]
    %v75 = vld [vmem:[#allocation5 + $0x88] sm:$0xff]
    %v76 = vld [vmem:[#allocation5 + $0x90] sm:$0xff]
    %v77 = vld [vmem:[#allocation5 + $0x98] sm:$0xff]
    %v78 = vld [vmem:[#allocation5 + $0xa0] sm:$0xff]
    %v79 = vld [vmem:[#allocation5 + $0xa8] sm:$0xff]
    %v80 = vld [vmem:[#allocation5 + $0xb0] sm:$0xff]
    %v81 = vld [vmem:[#allocation5 + $0xb8] sm:$0xff]
    %v82 = vld [vmem:[#allocation5 + $0xc0] sm:$0xff]
    %v83 = vld [vmem:[#allocation5 + $0xc8] sm:$0xff]
    %v84 = vld [vmem:[#allocation5 + $0xd0] sm:$0xff]
    %v85 = vld [vmem:[#allocation5 + $0xd8] sm:$0xff]
    %v86 = vld [vmem:[#allocation5 + $0xe0] sm:$0xff]
    %v87 = vld [vmem:[#allocation5 + $0xe8] sm:$0xff]
    %v88 = vld [vmem:[#allocation5 + $0xf0] sm:$0xff]
    %v89 = vld [vmem:[#allocation5 + $0xf8] sm:$0xff]
    %v90 = vld [vmem:[#allocation5 + $0x100] sm:$0xff]
    %v91 = vld [vmem:[#allocation5 + $0x108] sm:$0xff]
    %v92 = vld [vmem:[#allocation5 + $0x110] sm:$0xff]
    %v93 = vld [vmem:[#allocation5 + $0x118] sm:$0xff]
    %v94 = vld [vmem:[#allocation5 + $0x120] sm:$0xff]
    %v95 = vld [vmem:[#allocation5 + $0x128] sm:$0xff]
    %v96 = vld [vmem:[#allocation5 + $0x130] sm:$0xff]
    %v97 = vld [vmem:[#allocation5 + $0x138] sm:$0xff]
    %v98 = vld [vmem:[#allocation5 + $0x140] sm:$0xff]
    %v99 = vld [vmem:[#allocation5 + $0x148] sm:$0xff]
    %v100 = vld [vmem:[#allocation5 + $0x150] sm:$0xff]
    %v101 = vld [vmem:[#allocation5 + $0x158] sm:$0xff]
    %v102 = vld [vmem:[#allocation5 + $0x160] sm:$0xff]
    %v103 = vld [vmem:[#allocation5 + $0x168] sm:$0xff]
    %v104 = vld [vmem:[#allocation5 + $0x170] sm:$0xff]
    %v105 = vld [vmem:[#allocation5 + $0x178] sm:$0xff]
    %v106 = vld [vmem:[#allocation5 + $0x180] sm:$0xff]
    %v107 = vld [vmem:[#allocation5 + $0x188] sm:$0xff]
    %v108 = vld [vmem:[#allocation5 + $0x190] sm:$0xff]
    %v109 = vld [vmem:[#allocation5 + $0x198] sm:$0xff]
    %v110 = vld [vmem:[#allocation5 + $0x1a0] sm:$0xff]
    %v111 = vld [vmem:[#allocation5 + $0x1a8] sm:$0xff]
    %v112 = vld [vmem:[#allocation5 + $0x1b0] sm:$0xff]
    %v113 = vld [vmem:[#allocation5 + $0x1b8] sm:$0xff]
    %v114 = vld [vmem:[#allocation5 + $0x1c0] sm:$0xff]
    %v115 = vld [vmem:[#allocation5 + $0x1c8] sm:$0xff]
    %v116 = vld [vmem:[#allocation5 + $0x1d0] sm:$0xff]
    %v117 = vld [vmem:[#allocation5 + $0x1d8] sm:$0xff]
    %v118 = vld [vmem:[#allocation5 + $0x1e0] sm:$0xff]
    %v119 = vld [vmem:[#allocation5 + $0x1e8] sm:$0xff]
    %v120 = vld [vmem:[#allocation5 + $0x1f0] sm:$0xff]
    %v121 = vld [vmem:[#allocation5 + $0x1f8] sm:$0xff]
    %v122 = vld [vmem:[#allocation5 + $0x200] sm:$0xff]
    %v123 = vld [vmem:[#allocation5 + $0x208] sm:$0xff]
    %v124 = vld [vmem:[#allocation5 + $0x210] sm:$0xff]
    %v125 = vld [vmem:[#allocation5 + $0x218] sm:$0xff]
    %v126 = vld [vmem:[#allocation5 + $0x220] sm:$0xff]
    %v127 = vld [vmem:[#allocation5 + $0x228] sm:$0xff]
    %v128 = vld [vmem:[#allocation5 + $0x230] sm:$0xff]
    %v129 = vld [vmem:[#allocation5 + $0x238] sm:$0xff]
    %v130 = vld [vmem:[#allocation5 + $0x240] sm:$0xff]
    %v131 = vld [vmem:[#allocation5 + $0x248] sm:$0xff]
    %v132 = vld [vmem:[#allocation5 + $0x250] sm:$0xff]
    %v133 = vld [vmem:[#allocation5 + $0x258] sm:$0xff]
    %v134 = vld [vmem:[#allocation5 + $0x260] sm:$0xff]
    %v135 = vld [vmem:[#allocation5 + $0x268] sm:$0xff]
    %v136 = vld [vmem:[#allocation5 + $0x270] sm:$0xff]
    %v137 = vld [vmem:[#allocation5 + $0x278] sm:$0xff]
    %v138 = vld [vmem:[#allocation5 + $0x280] sm:$0xff]
    %v139 = vld [vmem:[#allocation5 + $0x288] sm:$0xff]
    %v140 = vld [vmem:[#allocation5 + $0x290] sm:$0xff]
    %v141 = vld [vmem:[#allocation5 + $0x298] sm:$0xff]
    %v142 = vld [vmem:[#allocation5 + $0x2a0] sm:$0xff]
    %v143 = vld [vmem:[#allocation5 + $0x2a8] sm:$0xff]
    %v144 = vld [vmem:[#allocation5 + $0x2b0] sm:$0xff]
    %v145 = vld [vmem:[#allocation5 + $0x2b8] sm:$0xff]
    %v146 = vld [vmem:[#allocation5 + $0x2c0] sm:$0xff]
    %v147 = vld [vmem:[#allocation5 + $0x2c8] sm:$0xff]
    %v148 = vld [vmem:[#allocation5 + $0x2d0] sm:$0xff]
    %v149 = vld [vmem:[#allocation5 + $0x2d8] sm:$0xff]
    %v150 = vld [vmem:[#allocation5 + $0x2e0] sm:$0xff]
    %v151 = vld [vmem:[#allocation5 + $0x2e8] sm:$0xff]
    %v152 = vld [vmem:[#allocation5 + $0x2f0] sm:$0xff]
    %v153 = vld [vmem:[#allocation5 + $0x2f8] sm:$0xff]
    %v154 = vld [vmem:[#allocation5 + $0x300] sm:$0xff]
    %v155 = vld [vmem:[#allocation5 + $0x308] sm:$0xff]
    %v156 = vld [vmem:[#allocation5 + $0x310] sm:$0xff]
    %v157 = vld [vmem:[#allocation5 + $0x318] sm:$0xff]
    %v158 = vld [vmem:[#allocation5 + $0x320] sm:$0xff]
    %v159 = vld [vmem:[#allocation5 + $0x328] sm:$0xff]
    %v160 = vld [vmem:[#allocation5 + $0x330] sm:$0xff]
    %v161 = vld [vmem:[#allocation5 + $0x338] sm:$0xff]
    %v162 = vld [vmem:[#allocation5 + $0x340] sm:$0xff]
    %v163 = vld [vmem:[#allocation5 + $0x348] sm:$0xff]
    %v164 = vld [vmem:[#allocation5 + $0x350] sm:$0xff]
    %v165 = vld [vmem:[#allocation5 + $0x358] sm:$0xff]
    %v166 = vld [vmem:[#allocation5 + $0x360] sm:$0xff]
    %v167 = vld [vmem:[#allocation5 + $0x368] sm:$0xff]
    %v168 = vld [vmem:[#allocation5 + $0x370] sm:$0xff]
    %v169 = vld [vmem:[#allocation5 + $0x378] sm:$0xff]
    %v170 = vld [vmem:[#allocation5 + $0x380] sm:$0xff]
    %v171 = vld [vmem:[#allocation5 + $0x388] sm:$0xff]
    %v172 = vld [vmem:[#allocation5 + $0x390] sm:$0xff]
    %v173 = vld [vmem:[#allocation5 + $0x398] sm:$0xff]
    %v174 = vld [vmem:[#allocation5 + $0x3a0] sm:$0xff]
    %v175 = vld [vmem:[#allocation5 + $0x3a8] sm:$0xff]
    %v176 = vld [vmem:[#allocation5 + $0x3b0] sm:$0xff]
    %v177 = vld [vmem:[#allocation5 + $0x3b8] sm:$0xff]
    %v178 = vld [vmem:[#allocation5 + $0x3c0] sm:$0xff]
    %v179 = vld [vmem:[#allocation5 + $0x3c8] sm:$0xff]
    %v180 = vld [vmem:[#allocation5 + $0x3d0] sm:$0xff]
    %v181 = vld [vmem:[#allocation5 + $0x3d8] sm:$0xff]
    %v182 = vld [vmem:[#allocation5 + $0x3e0] sm:$0xff]
    %v183 = vld [vmem:[#allocation5 + $0x3e8] sm:$0xff]
    %v184 = vld [vmem:[#allocation5 + $0x3f0] sm:$0xff]
    %v185 = vld [vmem:[#allocation5 + $0x3f8] sm:$0xff]
    %v186 = vld [vmem:[#allocation5 + $0x400] sm:$0xff]
    %v187 = vld [vmem:[#allocation5 + $0x408] sm:$0xff]
    %v188 = vld [vmem:[#allocation5 + $0x410] sm:$0xff]
    %v189 = vld [vmem:[#allocation5 + $0x418] sm:$0xff]
    %v190 = vld [vmem:[#allocation5 + $0x420] sm:$0xff]
    %v191 = vld [vmem:[#allocation5 + $0x428] sm:$0xff]
    %v192 = vld [vmem:[#allocation5 + $0x430] sm:$0xff]
    %v193 = vld [vmem:[#allocation5 + $0x438] sm:$0xff]
    %v194 = vld [vmem:[#allocation5 + $0x440] sm:$0xff]
    %v195 = vld [vmem:[#allocation5 + $0x448] sm:$0xff]
    %v196 = vld [vmem:[#allocation5 + $0x450] sm:$0xff]
    %v197 = vld [vmem:[#allocation5 + $0x458] sm:$0xff]
    %v198 = vld [vmem:[#allocation5 + $0x460] sm:$0xff]
    %v199 = vld [vmem:[#allocation5 + $0x468] sm:$0xff]
    %v200 = vld [vmem:[#allocation5 + $0x470] sm:$0xff]
    %v201 = vld [vmem:[#allocation5 + $0x478] sm:$0xff]
    %v202 = vld [vmem:[#allocation5 + $0x480] sm:$0xff]
    %v203 = vld [vmem:[#allocation5 + $0x488] sm:$0xff]
    %v204 = vld [vmem:[#allocation5 + $0x490] sm:$0xff]
    %v205 = vld [vmem:[#allocation5 + $0x498] sm:$0xff]
    %v206 = vld [vmem:[#allocation5 + $0x4a0] sm:$0xff]
    %v207 = vld [vmem:[#allocation5 + $0x4a8] sm:$0xff]
    %v208 = vld [vmem:[#allocation5 + $0x4b0] sm:$0xff]
    %v209 = vld [vmem:[#allocation5 + $0x4b8] sm:$0xff]
    %v210 = vld [vmem:[#allocation5 + $0x4c0] sm:$0xff]
    %v211 = vld [vmem:[#allocation5 + $0x4c8] sm:$0xff]
    %v212 = vld [vmem:[#allocation5 + $0x4d0] sm:$0xff]
    %v213 = vld [vmem:[#allocation5 + $0x4d8] sm:$0xff]
    %v214 = vld [vmem:[#allocation5 + $0x4e0] sm:$0xff]
    %v215 = vld [vmem:[#allocation5 + $0x4e8] sm:$0xff]
    %v216 = vld [vmem:[#allocation5 + $0x4f0] sm:$0xff]
    %v217 = vld [vmem:[#allocation5 + $0x4f8] sm:$0xff]
    %v218 = vld [vmem:[#allocation5 + $0x500] sm:$0xff]
    %v219 = vld [vmem:[#allocation5 + $0x508] sm:$0xff]
    %v220 = vld [vmem:[#allocation5 + $0x510] sm:$0xff]
    %v221 = vld [vmem:[#allocation5 + $0x518] sm:$0xff]
    %v222 = vld [vmem:[#allocation5 + $0x520] sm:$0xff]
    %v223 = vld [vmem:[#allocation5 + $0x528] sm:$0xff]
    %v224 = vld [vmem:[#allocation5 + $0x530] sm:$0xff]
    %v225 = vld [vmem:[#allocation5 + $0x538] sm:$0xff]
    %v226 = vld [vmem:[#allocation5 + $0x540] sm:$0xff]
    %v227 = vld [vmem:[#allocation5 + $0x548] sm:$0xff]
    %v228 = vld [vmem:[#allocation5 + $0x550] sm:$0xff]
    %v229 = vld [vmem:[#allocation5 + $0x558] sm:$0xff]
    %v230 = vld [vmem:[#allocation5 + $0x560] sm:$0xff]
    %v231 = vld [vmem:[#allocation5 + $0x568] sm:$0xff]
    %v232 = vld [vmem:[#allocation5 + $0x570] sm:$0xff]
    %v233 = vld [vmem:[#allocation5 + $0x578] sm:$0xff]
    %v234 = vld [vmem:[#allocation5 + $0x580] sm:$0xff]
    %v235 = vld [vmem:[#allocation5 + $0x588] sm:$0xff]
    %v236 = vld [vmem:[#allocation5 + $0x590] sm:$0xff]
    %v237 = vld [vmem:[#allocation5 + $0x598] sm:$0xff]
    %v238 = vld [vmem:[#allocation5 + $0x5a0] sm:$0xff]
    %v239 = vld [vmem:[#allocation5 + $0x5a8] sm:$0xff]
    %v240 = vld [vmem:[#allocation5 + $0x5b0] sm:$0xff]
    %v241 = vld [vmem:[#allocation5 + $0x5b8] sm:$0xff]
    %v242 = vld [vmem:[#allocation5 + $0x5c0] sm:$0xff]
    %v243 = vld [vmem:[#allocation5 + $0x5c8] sm:$0xff]
    %v244 = vld [vmem:[#allocation5 + $0x5d0] sm:$0xff]
    %v245 = vld [vmem:[#allocation5 + $0x5d8] sm:$0xff]
    %v246 = vld [vmem:[#allocation5 + $0x5e0] sm:$0xff]
    %v247 = vld [vmem:[#allocation5 + $0x5e8] sm:$0xff]
    %v248 = vld [vmem:[#allocation5 + $0x5f0] sm:$0xff]
    %v249 = vld [vmem:[#allocation5 + $0x5f8] sm:$0xff]
    %v250 = vld [vmem:[#allocation7] sm:$0x3f]
    %v252 = vlaneseq
    %v253 = vshrl.u32 %v252, 7
    %v254 = vsub.s32 0, %v253
    %v255 = vrot.slane %v250, %v254
    %v256 = vlaneseq
    %v257 = vshrl.u32 %v256, 7
    %v258 = vsub.s32 1, %v257
    %v259 = vrot.slane %v250, %v258
    %v260 = vlaneseq
    %v261 = vshrl.u32 %v260, 7
    %v262 = vsub.s32 2, %v261
    %v263 = vrot.slane %v250, %v262
    %v264 = vlaneseq
    %v265 = vshrl.u32 %v264, 7
    %v266 = vsub.s32 3, %v265
    %v267 = vrot.slane %v250, %v266
    %v268 = vlaneseq
    %v269 = vshrl.u32 %v268, 7
    %v270 = vsub.s32 4, %v269
    %v271 = vrot.slane %v250, %v270
    %v272 = vlaneseq
    %v273 = vshrl.u32 %v272, 7
    %v274 = vsub.s32 5, %v273
    %v275 = vrot.slane %v250, %v274
    %282 = vmatprep.subr.mxu0 %v149
    %283 = vmatpush1.msra.mxu0 %v148
    %284 = vmatprep.subr.mxu0 %v143
    %285 = vmatpush1.msra.mxu0 %v142
    %286 = vmatprep.subr.mxu0 %v137
    %287 = vmatpush1.msra.mxu0 %v136
    %288 = vmatprep.subr.mxu0 %v131
    %289 = vmatpush1.msra.mxu0 %v130
    %290 = vmatprep.subr.mxu0 %v125
    %291 = vmatpush1.msra.mxu0 %v124
    %292 = vmatprep.subr.mxu0 %v119
    %293 = vmatpush1.msra.mxu0 %v118
    %294 = vmatprep.subr.mxu0 %v113
    %295 = vmatpush1.msra.mxu0 %v112
    %296 = vmatprep.subr.mxu0 %v107
    %297 = vmatpush1.msra.mxu0 %v106
    %298 = vmatprep.subr.mxu0 %v101
    %299 = vmatpush1.msra.mxu0 %v100
    %300 = vmatprep.subr.mxu0 %v95
    %301 = vmatpush1.msra.mxu0 %v94
    %302 = vmatprep.subr.mxu0 %v89
    %303 = vmatpush1.msra.mxu0 %v88
    %304 = vmatprep.subr.mxu0 %v83
    %305 = vmatpush1.msra.mxu0 %v82
    %306 = vmatprep.subr.mxu0 %v77
    %307 = vmatpush1.msra.mxu0 %v76
    %308 = vmatprep.subr.mxu0 %v71
    %309 = vmatpush1.msra.mxu0 %v70
    %310 = vmatprep.subr.mxu0 %v65
    %311 = vmatpush1.msra.mxu0 %v64
    %312 = vmatprep.subr.mxu0 %v59
    %313 = vmatpush1.msra.mxu0 %v58
    %314 = vmatprep.subr.mxu0 %v245
    %315 = vmatpush2.msra.mxu0 %v244
    %316 = vmatprep.subr.mxu0 %v239
    %317 = vmatpush2.msra.mxu0 %v238
    %318 = vmatprep.subr.mxu0 %v233
    %319 = vmatpush2.msra.mxu0 %v232
    %320 = vmatprep.subr.mxu0 %v227
    %321 = vmatpush2.msra.mxu0 %v226
    %322 = vmatprep.subr.mxu0 %v221
    %323 = vmatpush2.msra.mxu0 %v220
    %324 = vmatprep.subr.mxu0 %v215
    %325 = vmatpush2.msra.mxu0 %v214
    %326 = vmatprep.subr.mxu0 %v209
    %327 = vmatpush2.msra.mxu0 %v208
    %328 = vmatprep.subr.mxu0 %v203
    %329 = vmatpush2.msra.mxu0 %v202
    %330 = vmatprep.subr.mxu0 %v197
    %331 = vmatpush2.msra.mxu0 %v196
    %332 = vmatprep.subr.mxu0 %v191
    %333 = vmatpush2.msra.mxu0 %v190
    %334 = vmatprep.subr.mxu0 %v185
    %335 = vmatpush2.msra.mxu0 %v184
    %336 = vmatprep.subr.mxu0 %v179
    %337 = vmatpush2.msra.mxu0 %v178
    %338 = vmatprep.subr.mxu0 %v173
    %339 = vmatpush2.msra.mxu0 %v172
    %340 = vmatprep.subr.mxu0 %v167
    %341 = vmatpush2.msra.mxu0 %v166
    %342 = vmatprep.subr.mxu0 %v161
    %343 = vmatpush2.msra.mxu0 %v160
    %344 = vmatprep.subr.mxu0 %v155
    %345 = vmatpush2.msra.mxu0 %v154
    %346 = vmatprep.mubr.f32.mxu0 %v55
    %347 = vmatmul.mubr.f32.gmra.mxu0 %v54
    %v348 = vpop.f32.mrf.mxu0
    %v349 = vadd.f32 %v255, %v348
    %v350 = vpop.f32.mrf.mxu0
    %v351 = vadd.f32 %v259, %v350
    %352 = vmatprep.mubr.f32.mxu0 %v57
    %353 = vmatmul.mubr.f32.gmra.mxu0 %v56
    %v354 = vpop.f32.mrf.mxu0
    %v355 = vadd.f32 %v255, %v354
    %v356 = vpop.f32.mrf.mxu0
    %v357 = vadd.f32 %v259, %v356
    %358 = vdwg.mxu0
    %359 = vmatprep.subr.mxu0 %v151
    %360 = vmatpush1.msra.mxu0 %v150
    %361 = vmatprep.subr.mxu0 %v145
    %362 = vmatpush1.msra.mxu0 %v144
    %363 = vmatprep.subr.mxu0 %v139
    %364 = vmatpush1.msra.mxu0 %v138
    %365 = vmatprep.subr.mxu0 %v133
    %366 = vmatpush1.msra.mxu0 %v132
    %367 = vmatprep.subr.mxu0 %v127
    %368 = vmatpush1.msra.mxu0 %v126
    %369 = vmatprep.subr.mxu0 %v121
    %370 = vmatpush1.msra.mxu0 %v120
    %371 = vmatprep.subr.mxu0 %v115
    %372 = vmatpush1.msra.mxu0 %v114
    %373 = vmatprep.subr.mxu0 %v109
    %374 = vmatpush1.msra.mxu0 %v108
    %375 = vmatprep.subr.mxu0 %v103
    %376 = vmatpush1.msra.mxu0 %v102
    %377 = vmatprep.subr.mxu0 %v97
    %378 = vmatpush1.msra.mxu0 %v96
    %379 = vmatprep.subr.mxu0 %v91
    %380 = vmatpush1.msra.mxu0 %v90
    %381 = vmatprep.subr.mxu0 %v85
    %382 = vmatpush1.msra.mxu0 %v84
    %383 = vmatprep.subr.mxu0 %v79
    %384 = vmatpush1.msra.mxu0 %v78
    %385 = vmatprep.subr.mxu0 %v73
    %386 = vmatpush1.msra.mxu0 %v72
    %387 = vmatprep.subr.mxu0 %v67
    %388 = vmatpush1.msra.mxu0 %v66
    %389 = vmatprep.subr.mxu0 %v61
    %390 = vmatpush1.msra.mxu0 %v60
    %391 = vmatprep.subr.mxu0 %v247
    %392 = vmatpush2.msra.mxu0 %v246
    %393 = vmatprep.subr.mxu0 %v241
    %394 = vmatpush2.msra.mxu0 %v240
    %395 = vmatprep.subr.mxu0 %v235
    %396 = vmatpush2.msra.mxu0 %v234
    %397 = vmatprep.subr.mxu0 %v229
    %398 = vmatpush2.msra.mxu0 %v228
    %399 = vmatprep.subr.mxu0 %v223
    %400 = vmatpush2.msra.mxu0 %v222
    %401 = vmatprep.subr.mxu0 %v217
    %402 = vmatpush2.msra.mxu0 %v216
    %403 = vmatprep.subr.mxu0 %v211
    %404 = vmatpush2.msra.mxu0 %v210
    %405 = vmatprep.subr.mxu0 %v205
    %406 = vmatpush2.msra.mxu0 %v204
    %407 = vmatprep.subr.mxu0 %v199
    %408 = vmatpush2.msra.mxu0 %v198
    %409 = vmatprep.subr.mxu0 %v193
    %410 = vmatpush2.msra.mxu0 %v192
    %411 = vmatprep.subr.mxu0 %v187
    %412 = vmatpush2.msra.mxu0 %v186
    %413 = vmatprep.subr.mxu0 %v181
    %414 = vmatpush2.msra.mxu0 %v180
    %415 = vmatprep.subr.mxu0 %v175
    %416 = vmatpush2.msra.mxu0 %v174
    %417 = vmatprep.subr.mxu0 %v169
    %418 = vmatpush2.msra.mxu0 %v168
    %419 = vmatprep.subr.mxu0 %v163
    %420 = vmatpush2.msra.mxu0 %v162
    %421 = vmatprep.subr.mxu0 %v157
    %422 = vmatpush2.msra.mxu0 %v156
    %423 = vmatprep.mubr.f32.mxu0 %v55
    %424 = vmatmul.mubr.f32.gmra.mxu0 %v54
    %v425 = vpop.f32.mrf.mxu0
    %v426 = vadd.f32 %v263, %v425
    %v427 = vpop.f32.mrf.mxu0
    %v428 = vadd.f32 %v267, %v427
    %429 = vmatprep.mubr.f32.mxu0 %v57
    %430 = vmatmul.mubr.f32.gmra.mxu0 %v56
    %v431 = vpop.f32.mrf.mxu0
    %v432 = vadd.f32 %v263, %v431
    %v433 = vpop.f32.mrf.mxu0
    %v434 = vadd.f32 %v267, %v433
    %435 = vdwg.mxu0
    %436 = vmatprep.subr.mxu0 %v153
    %437 = vmatpush1.msra.mxu0 %v152
    %438 = vmatprep.subr.mxu0 %v147
    %439 = vmatpush1.msra.mxu0 %v146
    %440 = vmatprep.subr.mxu0 %v141
    %441 = vmatpush1.msra.mxu0 %v140
    %442 = vmatprep.subr.mxu0 %v135
    %443 = vmatpush1.msra.mxu0 %v134
    %444 = vmatprep.subr.mxu0 %v129
    %445 = vmatpush1.msra.mxu0 %v128
    %446 = vmatprep.subr.mxu0 %v123
    %447 = vmatpush1.msra.mxu0 %v122
    %448 = vmatprep.subr.mxu0 %v117
    %449 = vmatpush1.msra.mxu0 %v116
    %450 = vmatprep.subr.mxu0 %v111
    %451 = vmatpush1.msra.mxu0 %v110
    %452 = vmatprep.subr.mxu0 %v105
    %453 = vmatpush1.msra.mxu0 %v104
    %454 = vmatprep.subr.mxu0 %v99
    %455 = vmatpush1.msra.mxu0 %v98
    %456 = vmatprep.subr.mxu0 %v93
    %457 = vmatpush1.msra.mxu0 %v92
    %458 = vmatprep.subr.mxu0 %v87
    %459 = vmatpush1.msra.mxu0 %v86
    %460 = vmatprep.subr.mxu0 %v81
    %461 = vmatpush1.msra.mxu0 %v80
    %462 = vmatprep.subr.mxu0 %v75
    %463 = vmatpush1.msra.mxu0 %v74
    %464 = vmatprep.subr.mxu0 %v69
    %465 = vmatpush1.msra.mxu0 %v68
    %466 = vmatprep.subr.mxu0 %v63
    %467 = vmatpush1.msra.mxu0 %v62
    %468 = vmatprep.subr.mxu0 %v249
    %469 = vmatpush2.msra.mxu0 %v248
    %470 = vmatprep.subr.mxu0 %v243
    %471 = vmatpush2.msra.mxu0 %v242
    %472 = vmatprep.subr.mxu0 %v237
    %473 = vmatpush2.msra.mxu0 %v236
    %474 = vmatprep.subr.mxu0 %v231
    %475 = vmatpush2.msra.mxu0 %v230
    %476 = vmatprep.subr.mxu0 %v225
    %477 = vmatpush2.msra.mxu0 %v224
    %478 = vmatprep.subr.mxu0 %v219
    %479 = vmatpush2.msra.mxu0 %v218
    %480 = vmatprep.subr.mxu0 %v213
    %481 = vmatpush2.msra.mxu0 %v212
    %482 = vmatprep.subr.mxu0 %v207
    %483 = vmatpush2.msra.mxu0 %v206
    %484 = vmatprep.subr.mxu0 %v201
    %485 = vmatpush2.msra.mxu0 %v200
    %486 = vmatprep.subr.mxu0 %v195
    %487 = vmatpush2.msra.mxu0 %v194
    %488 = vmatprep.subr.mxu0 %v189
    %489 = vmatpush2.msra.mxu0 %v188
    %490 = vmatprep.subr.mxu0 %v183
    %491 = vmatpush2.msra.mxu0 %v182
    %492 = vmatprep.subr.mxu0 %v177
    %493 = vmatpush2.msra.mxu0 %v176
    %494 = vmatprep.subr.mxu0 %v171
    %495 = vmatpush2.msra.mxu0 %v170
    %496 = vmatprep.subr.mxu0 %v165
    %497 = vmatpush2.msra.mxu0 %v164
    %498 = vmatprep.subr.mxu0 %v159
    %499 = vmatpush2.msra.mxu0 %v158
    %500 = vmatprep.mubr.f32.mxu0 %v55
    %501 = vmatmul.mubr.f32.gmra.mxu0 %v54
    %v502 = vpop.f32.mrf.mxu0
    %v503 = vadd.f32 %v271, %v502
    %v504 = vpop.f32.mrf.mxu0
    %v505 = vadd.f32 %v275, %v504
    %506 = vmatprep.mubr.f32.mxu0 %v57
    %507 = vmatmul.mubr.f32.gmra.mxu0 %v56
    %v508 = vpop.f32.mrf.mxu0
    %v509 = vadd.f32 %v271, %v508
    %v510 = vpop.f32.mrf.mxu0
    %v511 = vadd.f32 %v275, %v510
    %512 = vdwg.mxu0
    %513 = vmatprep.subr.mxu0 0.0
    %514 = vmatpush1.xpose.msra.mxu0 0.0
    %515 = vmatprep.subr.mxu0 0.0
    %516 = vmatpush1.xpose.msra.mxu0 0.0
    %517 = vmatprep.subr.mxu0 0.0
    %518 = vmatpush1.xpose.msra.mxu0 0.0
    %519 = vmatprep.subr.mxu0 0.0
    %520 = vmatpush1.xpose.msra.mxu0 0.0
    %521 = vmatprep.subr.mxu0 0.0
    %522 = vmatpush1.xpose.msra.mxu0 0.0
    %523 = vmatprep.subr.mxu0 0.0
    %524 = vmatpush1.xpose.msra.mxu0 0.0
    %525 = vmatprep.subr.mxu0 0.0
    %526 = vmatpush1.xpose.msra.mxu0 0.0
    %527 = vmatprep.subr.mxu0 0.0
    %528 = vmatpush1.xpose.msra.mxu0 0.0
    %529 = vmatprep.subr.mxu0 0.0
    %530 = vmatpush1.xpose.msra.mxu0 0.0
    %531 = vmatprep.subr.mxu0 0.0
    %532 = vmatpush1.xpose.msra.mxu0 0.0
    %533 = vmatprep.subr.mxu0 0.0
    %534 = vmatpush1.xpose.msra.mxu0 0.0
    %535 = vmatprep.subr.mxu0 0.0
    %536 = vmatpush1.xpose.msra.mxu0 0.0
    %537 = vmatprep.subr.mxu0 0.0
    %538 = vmatpush1.xpose.msra.mxu0 0.0
    %539 = vmatprep.subr.mxu0 0.0
    %540 = vmatpush1.xpose.msra.mxu0 0.0
    %541 = vmatprep.subr.mxu0 0.0
    %542 = vmatpush1.xpose.msra.mxu0 0.0
    %543 = vmatprep.subr.mxu0 %v428
    %544 = vmatpush1.xpose.msra.mxu0 %v426
    %545 = vmatprep.subr.mxu0 0.0
    %546 = vmatpush2.xpose.msra.mxu0 0.0
    %547 = vmatprep.subr.mxu0 0.0
    %548 = vmatpush2.xpose.msra.mxu0 0.0
    %549 = vmatprep.subr.mxu0 0.0
    %550 = vmatpush2.xpose.msra.mxu0 0.0
    %551 = vmatprep.subr.mxu0 0.0
    %552 = vmatpush2.xpose.msra.mxu0 0.0
    %553 = vmatprep.subr.mxu0 0.0
    %554 = vmatpush2.xpose.msra.mxu0 0.0
    %555 = vmatprep.subr.mxu0 0.0
    %556 = vmatpush2.xpose.msra.mxu0 0.0
    %557 = vmatprep.subr.mxu0 0.0
    %558 = vmatpush2.xpose.msra.mxu0 0.0
    %559 = vmatprep.subr.mxu0 0.0
    %560 = vmatpush2.xpose.msra.mxu0 0.0
    %561 = vmatprep.subr.mxu0 0.0
    %562 = vmatpush2.xpose.msra.mxu0 0.0
    %563 = vmatprep.subr.mxu0 0.0
    %564 = vmatpush2.xpose.msra.mxu0 0.0
    %565 = vmatprep.subr.mxu0 0.0
    %566 = vmatpush2.xpose.msra.mxu0 0.0
    %567 = vmatprep.subr.mxu0 0.0
    %568 = vmatpush2.xpose.msra.mxu0 0.0
    %569 = vmatprep.subr.mxu0 0.0
    %570 = vmatpush2.xpose.msra.mxu0 0.0
    %571 = vmatprep.subr.mxu0 0.0
    %572 = vmatpush2.xpose.msra.mxu0 0.0
    %573 = vmatprep.subr.mxu0 0.0
    %574 = vmatpush2.xpose.msra.mxu0 0.0
    %575 = vmatprep.subr.mxu0 0.0
    %576 = vmatpush2.xpose.msra.mxu0 0.0
    %577 = vmatprep.mubr.f32.mxu0 %v351
    %578 = vmatmul.mubr.f32.gmra.mxu0 %v349
    %v579 = vpop.f32.mrf.mxu0
    %v580 = vadd.f32 0.0, %v579
    %v581 = vpop.f32.mrf.mxu0
    %582 = vdwg.mxu0
    %583 = vmatprep.subr.mxu0 0.0
    %584 = vmatpush1.xpose.msra.mxu0 0.0
    %585 = vmatprep.subr.mxu0 0.0
    %586 = vmatpush1.xpose.msra.mxu0 0.0
    %587 = vmatprep.subr.mxu0 0.0
    %588 = vmatpush1.xpose.msra.mxu0 0.0
    %589 = vmatprep.subr.mxu0 0.0
    %590 = vmatpush1.xpose.msra.mxu0 0.0
    %591 = vmatprep.subr.mxu0 0.0
    %592 = vmatpush1.xpose.msra.mxu0 0.0
    %593 = vmatprep.subr.mxu0 0.0
    %594 = vmatpush1.xpose.msra.mxu0 0.0
    %595 = vmatprep.subr.mxu0 0.0
    %596 = vmatpush1.xpose.msra.mxu0 0.0
    %597 = vmatprep.subr.mxu0 0.0
    %598 = vmatpush1.xpose.msra.mxu0 0.0
    %599 = vmatprep.subr.mxu0 0.0
    %600 = vmatpush1.xpose.msra.mxu0 0.0
    %601 = vmatprep.subr.mxu0 0.0
    %602 = vmatpush1.xpose.msra.mxu0 0.0
    %603 = vmatprep.subr.mxu0 0.0
    %604 = vmatpush1.xpose.msra.mxu0 0.0
    %605 = vmatprep.subr.mxu0 0.0
    %606 = vmatpush1.xpose.msra.mxu0 0.0
    %607 = vmatprep.subr.mxu0 0.0
    %608 = vmatpush1.xpose.msra.mxu0 0.0
    %609 = vmatprep.subr.mxu0 0.0
    %610 = vmatpush1.xpose.msra.mxu0 0.0
    %611 = vmatprep.subr.mxu0 0.0
    %612 = vmatpush1.xpose.msra.mxu0 0.0
    %613 = vmatprep.subr.mxu0 %v434
    %614 = vmatpush1.xpose.msra.mxu0 %v432
    %615 = vmatprep.subr.mxu0 0.0
    %616 = vmatpush2.xpose.msra.mxu0 0.0
    %617 = vmatprep.subr.mxu0 0.0
    %618 = vmatpush2.xpose.msra.mxu0 0.0
    %619 = vmatprep.subr.mxu0 0.0
    %620 = vmatpush2.xpose.msra.mxu0 0.0
    %621 = vmatprep.subr.mxu0 0.0
    %622 = vmatpush2.xpose.msra.mxu0 0.0
    %623 = vmatprep.subr.mxu0 0.0
    %624 = vmatpush2.xpose.msra.mxu0 0.0
    %625 = vmatprep.subr.mxu0 0.0
    %626 = vmatpush2.xpose.msra.mxu0 0.0
    %627 = vmatprep.subr.mxu0 0.0
    %628 = vmatpush2.xpose.msra.mxu0 0.0
    %629 = vmatprep.subr.mxu0 0.0
    %630 = vmatpush2.xpose.msra.mxu0 0.0
    %631 = vmatprep.subr.mxu0 0.0
    %632 = vmatpush2.xpose.msra.mxu0 0.0
    %633 = vmatprep.subr.mxu0 0.0
    %634 = vmatpush2.xpose.msra.mxu0 0.0
    %635 = vmatprep.subr.mxu0 0.0
    %636 = vmatpush2.xpose.msra.mxu0 0.0
    %637 = vmatprep.subr.mxu0 0.0
    %638 = vmatpush2.xpose.msra.mxu0 0.0
    %639 = vmatprep.subr.mxu0 0.0
    %640 = vmatpush2.xpose.msra.mxu0 0.0
    %641 = vmatprep.subr.mxu0 0.0
    %642 = vmatpush2.xpose.msra.mxu0 0.0
    %643 = vmatprep.subr.mxu0 0.0
    %644 = vmatpush2.xpose.msra.mxu0 0.0
    %645 = vmatprep.subr.mxu0 0.0
    %646 = vmatpush2.xpose.msra.mxu0 0.0
    %647 = vmatprep.mubr.f32.mxu0 %v357
    %648 = vmatmul.mubr.f32.gmra.mxu0 %v355
    %v649 = vpop.f32.mrf.mxu0
    %v650 = vadd.f32 0.0, %v649
    %v651 = vpop.f32.mrf.mxu0
    %652 = vdwg.mxu0
    %vm653 = vcmask 64512
    %v654 = vsel %vm653, %v580, -inf
    %655 = vmax.xlane.f32.xlu0 %v654
    %v656 = vpop.xlane.xlu0 %655
    %v657 = vsel %vm653, %v650, -inf
    %658 = vmax.xlane.f32.xlu0 %v657
    %v659 = vpop.xlane.xlu0 %658
    %v660 = vsub.f32 %v580, %v656
    %v661 = vsub.f32 %v650, %v659
    %v662 = vmul.f32 %v660, 1.442695
    %v663 = vpow.pop %v662
    %v664 = vmul.f32 %v661, 1.442695
    %v665 = vpow.pop %v664
    %v666 = vsel %vm653, %v663, 0.0
    %667 = vadd.xlane.f32.xlu0 %v666
    %v668 = vpop.xlane.xlu0 %667
    %v669 = vsel %vm653, %v665, 0.0
    %670 = vadd.xlane.f32.xlu0 %v669
    %v671 = vpop.xlane.xlu0 %670
    %v672 = vmul.f32 %v668, 8.0
    %v673 = vmul.f32 %v671, 8.0
    %v674 = vrcp.pop %v672
    %v675 = vmul.f32 1.0, %v674
    %v676 = vrcp.pop %v673
    %v677 = vmul.f32 1.0, %v676
    %678 = vxpose.xlu0.b32.start [1/16] %v675, 128
    %679 = vxpose.xlu0.b32.cont [2/16] 0.0, 128
    %680 = vxpose.xlu0.b32.cont [3/16] 0.0, 128
    %681 = vxpose.xlu0.b32.cont [4/16] 0.0, 128
    %682 = vxpose.xlu0.b32.cont [5/16] 0.0, 128
    %683 = vxpose.xlu0.b32.cont [6/16] 0.0, 128
    %684 = vxpose.xlu0.b32.cont [7/16] 0.0, 128
    %685 = vxpose.xlu0.b32.cont [8/16] 0.0, 128
    %686 = vxpose.xlu0.b32.cont [9/16] 0.0, 128
    %687 = vxpose.xlu0.b32.cont [10/16] 0.0, 128
    %688 = vxpose.xlu0.b32.cont [11/16] 0.0, 128
    %689 = vxpose.xlu0.b32.cont [12/16] 0.0, 128
    %690 = vxpose.xlu0.b32.cont [13/16] 0.0, 128
    %691 = vxpose.xlu0.b32.cont [14/16] 0.0, 128
    %692 = vxpose.xlu0.b32.cont [15/16] 0.0, 128
    %693 = vxpose.xlu0.b32.end [16/16] 0.0, 128
    %v694 = vpop.trf.xlu0
    %v695 = vpop.trf.xlu0
    %v696 = vpop.trf.xlu0
    %v697 = vpop.trf.xlu0
    %v698 = vpop.trf.xlu0
    %v699 = vpop.trf.xlu0
    %v700 = vpop.trf.xlu0
    %v701 = vpop.trf.xlu0
    %v702 = vpop.trf.xlu0
    %v703 = vpop.trf.xlu0
    %v704 = vpop.trf.xlu0
    %v705 = vpop.trf.xlu0
    %v706 = vpop.trf.xlu0
    %v707 = vpop.trf.xlu0
    %v708 = vpop.trf.xlu0
    %v709 = vpop.trf.xlu0
    %v711 = vsel %vm653, %v694, 0
    %713 = vmatprep.subr.mxu0 0.0
    %714 = vmatpush1.msra.mxu0 0.0
    %715 = vmatprep.subr.mxu0 0.0
    %716 = vmatpush1.msra.mxu0 0.0
    %717 = vmatprep.subr.mxu0 0.0
    %718 = vmatpush1.msra.mxu0 0.0
    %719 = vmatprep.subr.mxu0 0.0
    %720 = vmatpush1.msra.mxu0 0.0
    %721 = vmatprep.subr.mxu0 0.0
    %722 = vmatpush1.msra.mxu0 0.0
    %723 = vmatprep.subr.mxu0 0.0
    %724 = vmatpush1.msra.mxu0 0.0
    %725 = vmatprep.subr.mxu0 0.0
    %726 = vmatpush1.msra.mxu0 0.0
    %727 = vmatprep.subr.mxu0 0.0
    %728 = vmatpush1.msra.mxu0 0.0
    %729 = vmatprep.subr.mxu0 0.0
    %730 = vmatpush1.msra.mxu0 0.0
    %731 = vmatprep.subr.mxu0 0.0
    %732 = vmatpush1.msra.mxu0 0.0
    %733 = vmatprep.subr.mxu0 0.0
    %734 = vmatpush1.msra.mxu0 0.0
    %735 = vmatprep.subr.mxu0 0.0
    %736 = vmatpush1.msra.mxu0 0.0
    %737 = vmatprep.subr.mxu0 0.0
    %738 = vmatpush1.msra.mxu0 0.0
    %739 = vmatprep.subr.mxu0 0.0
    %740 = vmatpush1.msra.mxu0 0.0
    %741 = vmatprep.subr.mxu0 0.0
    %742 = vmatpush1.msra.mxu0 0.0
    %743 = vmatprep.subr.mxu0 0.0
    %744 = vmatpush1.msra.mxu0 %v663
    %745 = vmatprep.subr.mxu0 0.0
    %746 = vmatpush2.msra.mxu0 0.0
    %747 = vmatprep.subr.mxu0 0.0
    %748 = vmatpush2.msra.mxu0 0.0
    %749 = vmatprep.subr.mxu0 0.0
    %750 = vmatpush2.msra.mxu0 0.0
    %751 = vmatprep.subr.mxu0 0.0
    %752 = vmatpush2.msra.mxu0 0.0
    %753 = vmatprep.subr.mxu0 0.0
    %754 = vmatpush2.msra.mxu0 0.0
    %755 = vmatprep.subr.mxu0 0.0
    %756 = vmatpush2.msra.mxu0 0.0
    %757 = vmatprep.subr.mxu0 0.0
    %758 = vmatpush2.msra.mxu0 0.0
    %759 = vmatprep.subr.mxu0 0.0
    %760 = vmatpush2.msra.mxu0 0.0
    %761 = vmatprep.subr.mxu0 0.0
    %762 = vmatpush2.msra.mxu0 0.0
    %763 = vmatprep.subr.mxu0 0.0
    %764 = vmatpush2.msra.mxu0 0.0
    %765 = vmatprep.subr.mxu0 0.0
    %766 = vmatpush2.msra.mxu0 0.0
    %767 = vmatprep.subr.mxu0 0.0
    %768 = vmatpush2.msra.mxu0 0.0
    %769 = vmatprep.subr.mxu0 0.0
    %770 = vmatpush2.msra.mxu0 0.0
    %771 = vmatprep.subr.mxu0 0.0
    %772 = vmatpush2.msra.mxu0 0.0
    %773 = vmatprep.subr.mxu0 0.0
    %774 = vmatpush2.msra.mxu0 0.0
    %775 = vmatprep.subr.mxu0 0.0
    %776 = vmatpush2.msra.mxu0 0.0
    %777 = vmatprep.mubr.f32.mxu0 0.0
    %778 = vmatmul.mubr.f32.gmra.mxu0 %v711
    %v779 = vpop.f32.mrf.mxu0
    %v780 = vadd.f32 0.0, %v779
    %v781 = vpop.f32.mrf.mxu0
    %782 = vdwg.mxu0
    %783 = vxpose.xlu0.b32.start [1/16] %v677, 128
    %784 = vxpose.xlu0.b32.cont [2/16] 0.0, 128
    %785 = vxpose.xlu0.b32.cont [3/16] 0.0, 128
    %786 = vxpose.xlu0.b32.cont [4/16] 0.0, 128
    %787 = vxpose.xlu0.b32.cont [5/16] 0.0, 128
    %788 = vxpose.xlu0.b32.cont [6/16] 0.0, 128
    %789 = vxpose.xlu0.b32.cont [7/16] 0.0, 128
    %790 = vxpose.xlu0.b32.cont [8/16] 0.0, 128
    %791 = vxpose.xlu0.b32.cont [9/16] 0.0, 128
    %792 = vxpose.xlu0.b32.cont [10/16] 0.0, 128
    %793 = vxpose.xlu0.b32.cont [11/16] 0.0, 128
    %794 = vxpose.xlu0.b32.cont [12/16] 0.0, 128
    %795 = vxpose.xlu0.b32.cont [13/16] 0.0, 128
    %796 = vxpose.xlu0.b32.cont [14/16] 0.0, 128
    %797 = vxpose.xlu0.b32.cont [15/16] 0.0, 128
    %798 = vxpose.xlu0.b32.end [16/16] 0.0, 128
    %v799 = vpop.trf.xlu0
    %v800 = vpop.trf.xlu0
    %v801 = vpop.trf.xlu0
    %v802 = vpop.trf.xlu0
    %v803 = vpop.trf.xlu0
    %v804 = vpop.trf.xlu0
    %v805 = vpop.trf.xlu0
    %v806 = vpop.trf.xlu0
    %v807 = vpop.trf.xlu0
    %v808 = vpop.trf.xlu0
    %v809 = vpop.trf.xlu0
    %v810 = vpop.trf.xlu0
    %v811 = vpop.trf.xlu0
    %v812 = vpop.trf.xlu0
    %v813 = vpop.trf.xlu0
    %v814 = vpop.trf.xlu0
    %v816 = vsel %vm653, %v799, 0
    %818 = vmatprep.subr.mxu0 0.0
    %819 = vmatpush1.msra.mxu0 0.0
    %820 = vmatprep.subr.mxu0 0.0
    %821 = vmatpush1.msra.mxu0 0.0
    %822 = vmatprep.subr.mxu0 0.0
    %823 = vmatpush1.msra.mxu0 0.0
    %824 = vmatprep.subr.mxu0 0.0
    %825 = vmatpush1.msra.mxu0 0.0
    %826 = vmatprep.subr.mxu0 0.0
    %827 = vmatpush1.msra.mxu0 0.0
    %828 = vmatprep.subr.mxu0 0.0
    %829 = vmatpush1.msra.mxu0 0.0
    %830 = vmatprep.subr.mxu0 0.0
    %831 = vmatpush1.msra.mxu0 0.0
    %832 = vmatprep.subr.mxu0 0.0
    %833 = vmatpush1.msra.mxu0 0.0
    %834 = vmatprep.subr.mxu0 0.0
    %835 = vmatpush1.msra.mxu0 0.0
    %836 = vmatprep.subr.mxu0 0.0
    %837 = vmatpush1.msra.mxu0 0.0
    %838 = vmatprep.subr.mxu0 0.0
    %839 = vmatpush1.msra.mxu0 0.0
    %840 = vmatprep.subr.mxu0 0.0
    %841 = vmatpush1.msra.mxu0 0.0
    %842 = vmatprep.subr.mxu0 0.0
    %843 = vmatpush1.msra.mxu0 0.0
    %844 = vmatprep.subr.mxu0 0.0
    %845 = vmatpush1.msra.mxu0 0.0
    %846 = vmatprep.subr.mxu0 0.0
    %847 = vmatpush1.msra.mxu0 0.0
    %848 = vmatprep.subr.mxu0 0.0
    %849 = vmatpush1.msra.mxu0 %v665
    %850 = vmatprep.subr.mxu0 0.0
    %851 = vmatpush2.msra.mxu0 0.0
    %852 = vmatprep.subr.mxu0 0.0
    %853 = vmatpush2.msra.mxu0 0.0
    %854 = vmatprep.subr.mxu0 0.0
    %855 = vmatpush2.msra.mxu0 0.0
    %856 = vmatprep.subr.mxu0 0.0
    %857 = vmatpush2.msra.mxu0 0.0
    %858 = vmatprep.subr.mxu0 0.0
    %859 = vmatpush2.msra.mxu0 0.0
    %860 = vmatprep.subr.mxu0 0.0
    %861 = vmatpush2.msra.mxu0 0.0
    %862 = vmatprep.subr.mxu0 0.0
    %863 = vmatpush2.msra.mxu0 0.0
    %864 = vmatprep.subr.mxu0 0.0
    %865 = vmatpush2.msra.mxu0 0.0
    %866 = vmatprep.subr.mxu0 0.0
    %867 = vmatpush2.msra.mxu0 0.0
    %868 = vmatprep.subr.mxu0 0.0
    %869 = vmatpush2.msra.mxu0 0.0
    %870 = vmatprep.subr.mxu0 0.0
    %871 = vmatpush2.msra.mxu0 0.0
    %872 = vmatprep.subr.mxu0 0.0
    %873 = vmatpush2.msra.mxu0 0.0
    %874 = vmatprep.subr.mxu0 0.0
    %875 = vmatpush2.msra.mxu0 0.0
    %876 = vmatprep.subr.mxu0 0.0
    %877 = vmatpush2.msra.mxu0 0.0
    %878 = vmatprep.subr.mxu0 0.0
    %879 = vmatpush2.msra.mxu0 0.0
    %880 = vmatprep.subr.mxu0 0.0
    %881 = vmatpush2.msra.mxu0 0.0
    %882 = vmatprep.mubr.f32.mxu0 0.0
    %883 = vmatmul.mubr.f32.gmra.mxu0 %v816
    %v884 = vpop.f32.mrf.mxu0
    %v885 = vadd.f32 0.0, %v884
    %v886 = vpop.f32.mrf.mxu0
    %887 = vdwg.mxu0
    %v889 = vsel %vm653, %v780, 0
    %891 = vmatprep.subr.mxu0 0.0
    %892 = vmatpush1.msra.mxu0 0.0
    %893 = vmatprep.subr.mxu0 0.0
    %894 = vmatpush1.msra.mxu0 0.0
    %895 = vmatprep.subr.mxu0 0.0
    %896 = vmatpush1.msra.mxu0 0.0
    %897 = vmatprep.subr.mxu0 0.0
    %898 = vmatpush1.msra.mxu0 0.0
    %899 = vmatprep.subr.mxu0 0.0
    %900 = vmatpush1.msra.mxu0 0.0
    %901 = vmatprep.subr.mxu0 0.0
    %902 = vmatpush1.msra.mxu0 0.0
    %903 = vmatprep.subr.mxu0 0.0
    %904 = vmatpush1.msra.mxu0 0.0
    %905 = vmatprep.subr.mxu0 0.0
    %906 = vmatpush1.msra.mxu0 0.0
    %907 = vmatprep.subr.mxu0 0.0
    %908 = vmatpush1.msra.mxu0 0.0
    %909 = vmatprep.subr.mxu0 0.0
    %910 = vmatpush1.msra.mxu0 0.0
    %911 = vmatprep.subr.mxu0 0.0
    %912 = vmatpush1.msra.mxu0 0.0
    %913 = vmatprep.subr.mxu0 0.0
    %914 = vmatpush1.msra.mxu0 0.0
    %915 = vmatprep.subr.mxu0 0.0
    %916 = vmatpush1.msra.mxu0 0.0
    %917 = vmatprep.subr.mxu0 0.0
    %918 = vmatpush1.msra.mxu0 0.0
    %919 = vmatprep.subr.mxu0 0.0
    %920 = vmatpush1.msra.mxu0 0.0
    %921 = vmatprep.subr.mxu0 %v505
    %922 = vmatpush1.msra.mxu0 %v503
    %923 = vmatprep.subr.mxu0 0.0
    %924 = vmatpush2.msra.mxu0 0.0
    %925 = vmatprep.subr.mxu0 0.0
    %926 = vmatpush2.msra.mxu0 0.0
    %927 = vmatprep.subr.mxu0 0.0
    %928 = vmatpush2.msra.mxu0 0.0
    %929 = vmatprep.subr.mxu0 0.0
    %930 = vmatpush2.msra.mxu0 0.0
    %931 = vmatprep.subr.mxu0 0.0
    %932 = vmatpush2.msra.mxu0 0.0
    %933 = vmatprep.subr.mxu0 0.0
    %934 = vmatpush2.msra.mxu0 0.0
    %935 = vmatprep.subr.mxu0 0.0
    %936 = vmatpush2.msra.mxu0 0.0
    %937 = vmatprep.subr.mxu0 0.0
    %938 = vmatpush2.msra.mxu0 0.0
    %939 = vmatprep.subr.mxu0 0.0
    %940 = vmatpush2.msra.mxu0 0.0
    %941 = vmatprep.subr.mxu0 0.0
    %942 = vmatpush2.msra.mxu0 0.0
    %943 = vmatprep.subr.mxu0 0.0
    %944 = vmatpush2.msra.mxu0 0.0
    %945 = vmatprep.subr.mxu0 0.0
    %946 = vmatpush2.msra.mxu0 0.0
    %947 = vmatprep.subr.mxu0 0.0
    %948 = vmatpush2.msra.mxu0 0.0
    %949 = vmatprep.subr.mxu0 0.0
    %950 = vmatpush2.msra.mxu0 0.0
    %951 = vmatprep.subr.mxu0 0.0
    %952 = vmatpush2.msra.mxu0 0.0
    %953 = vmatprep.subr.mxu0 0.0
    %954 = vmatpush2.msra.mxu0 0.0
    %955 = vmatprep.mubr.f32.mxu0 0.0
    %956 = vmatmul.mubr.f32.gmra.mxu0 %v889
    %v957 = vpop.f32.mrf.mxu0
    %v958 = vadd.f32 0.0, %v957
    %v959 = vpop.f32.mrf.mxu0
    %v960 = vadd.f32 0.0, %v959
    %961 = vdwg.mxu0
    %v963 = vsel %vm653, %v885, 0
    %965 = vmatprep.subr.mxu0 0.0
    %966 = vmatpush1.msra.mxu0 0.0
    %967 = vmatprep.subr.mxu0 0.0
    %968 = vmatpush1.msra.mxu0 0.0
    %969 = vmatprep.subr.mxu0 0.0
    %970 = vmatpush1.msra.mxu0 0.0
    %971 = vmatprep.subr.mxu0 0.0
    %972 = vmatpush1.msra.mxu0 0.0
    %973 = vmatprep.subr.mxu0 0.0
    %974 = vmatpush1.msra.mxu0 0.0
    %975 = vmatprep.subr.mxu0 0.0
    %976 = vmatpush1.msra.mxu0 0.0
    %977 = vmatprep.subr.mxu0 0.0
    %978 = vmatpush1.msra.mxu0 0.0
    %979 = vmatprep.subr.mxu0 0.0
    %980 = vmatpush1.msra.mxu0 0.0
    %981 = vmatprep.subr.mxu0 0.0
    %982 = vmatpush1.msra.mxu0 0.0
    %983 = vmatprep.subr.mxu0 0.0
    %984 = vmatpush1.msra.mxu0 0.0
    %985 = vmatprep.subr.mxu0 0.0
    %986 = vmatpush1.msra.mxu0 0.0
    %987 = vmatprep.subr.mxu0 0.0
    %988 = vmatpush1.msra.mxu0 0.0
    %989 = vmatprep.subr.mxu0 0.0
    %990 = vmatpush1.msra.mxu0 0.0
    %991 = vmatprep.subr.mxu0 0.0
    %992 = vmatpush1.msra.mxu0 0.0
    %993 = vmatprep.subr.mxu0 0.0
    %994 = vmatpush1.msra.mxu0 0.0
    %995 = vmatprep.subr.mxu0 %v511
    %996 = vmatpush1.msra.mxu0 %v509
    %997 = vmatprep.subr.mxu0 0.0
    %998 = vmatpush2.msra.mxu0 0.0
    %999 = vmatprep.subr.mxu0 0.0
    %1000 = vmatpush2.msra.mxu0 0.0
    %1001 = vmatprep.subr.mxu0 0.0
    %1002 = vmatpush2.msra.mxu0 0.0
    %1003 = vmatprep.subr.mxu0 0.0
    %1004 = vmatpush2.msra.mxu0 0.0
    %1005 = vmatprep.subr.mxu0 0.0
    %1006 = vmatpush2.msra.mxu0 0.0
    %1007 = vmatprep.subr.mxu0 0.0
    %1008 = vmatpush2.msra.mxu0 0.0
    %1009 = vmatprep.subr.mxu0 0.0
    %1010 = vmatpush2.msra.mxu0 0.0
    %1011 = vmatprep.subr.mxu0 0.0
    %1012 = vmatpush2.msra.mxu0 0.0
    %1013 = vmatprep.subr.mxu0 0.0
    %1014 = vmatpush2.msra.mxu0 0.0
    %1015 = vmatprep.subr.mxu0 0.0
    %1016 = vmatpush2.msra.mxu0 0.0
    %1017 = vmatprep.subr.mxu0 0.0
    %1018 = vmatpush2.msra.mxu0 0.0
    %1019 = vmatprep.subr.mxu0 0.0
    %1020 = vmatpush2.msra.mxu0 0.0
    %1021 = vmatprep.subr.mxu0 0.0
    %1022 = vmatpush2.msra.mxu0 0.0
    %1023 = vmatprep.subr.mxu0 0.0
    %1024 = vmatpush2.msra.mxu0 0.0
    %1025 = vmatprep.subr.mxu0 0.0
    %1026 = vmatpush2.msra.mxu0 0.0
    %1027 = vmatprep.subr.mxu0 0.0
    %1028 = vmatpush2.msra.mxu0 0.0
    %1029 = vmatprep.mubr.f32.mxu0 0.0
    %1030 = vmatmul.mubr.f32.gmra.mxu0 %v963
    %v1031 = vpop.f32.mrf.mxu0
    %v1032 = vadd.f32 0.0, %v1031
    %v1033 = vpop.f32.mrf.mxu0
    %v1034 = vadd.f32 0.0, %v1033
    %1035 = vdwg.mxu0
    %v1040 = vcombine.low %v958, %v960
    %v1042 = vunpack.c.l.s4 1983009808
    %v1043 = vunpack.c.0.s8 %v1042
    %v1044 = vlaneseq
    %v1045 = vshrl.u32 %v1044, 7
    %v1046 = vsub.s32 %v1043, %v1045
    %v1047 = vrot.slane %v1040, %v1046
    %v1048 = vcombine.low %v1032, %v1034
    %v1050 = vunpack.c.l.s4 1983009808
    %v1051 = vunpack.c.0.s8 %v1050
    %v1052 = vlaneseq
    %v1053 = vshrl.u32 %v1052, 7
    %v1054 = vsub.s32 %v1051, %v1053
    %v1055 = vrot.slane %v1048, %v1054
    %vm1056 = vcmask 1044484
    %v1057 = vsel %vm1056, %v1047, %v1047
    %vm1058 = vcmask 1046534
    %v1059 = vsel %vm1058, %v1047, %v1057
    %v1060 = vrot.slane %v1055, 7
    %vm1061 = vcmask 1041409
    %v1062 = vsel %vm1061, %v1060, %v1059
    %vm1063 = vcmask 1043459
    %v1064 = vsel %vm1063, %v1060, %v1062
    %vm1065 = vcmask 1045509
    %v1066 = vsel %vm1065, %v1060, %v1064
    %vm1067 = vcmask 1047559
    %v1068 = vsel %vm1067, %v1060, %v1066
    %1070 = vst [vmem:[#allocation8] sm:$0xf] %v1068
    // Predicated region
    $region26: #{tpu_custom_call.1} parent=1 // pred_check
      _
    $region27: #{tpu_custom_call.1} parent=1 // pred_check_branch
      %1072 = sbr.rel (0) target = $region29
    $region28: #{tpu_custom_call.1} parent=1 // pred_region
      %s1074 = ssub.s32 64, 64
      %1075 = vsyncadd [#allocation4], %s1074
      %s1077 = sshll.u32 [#allocation8], 4
      %s1078 = int_to_ptr.vmem [resolvable:$true] %s1077
      %1080 = dma.vmem_to_hbm [thread:$0]  %s1078, 64, %s3, [#allocation4]
    $region29: #{tpu_custom_call.1} parent=1 // pred_fallthru
      _
    // Predicated region
    $region30: #{tpu_custom_call.1} parent=1 // pred_check
      _
    $region31: #{tpu_custom_call.1} parent=1 // pred_check_branch
      %1082 = sbr.rel (0) target = $region33
    $region32: #{tpu_custom_call.1} parent=1 // pred_region
      %1083 = dma.done [#allocation4], 64
    $region33: #{tpu_custom_call.1} parent=1 // pred_fallthru
      _
    %1084 = vsyncpa [#allocation3], 1
    %1085 = vsyncpa [#allocation6], 1
    %1086 = vsyncpa [#allocation4], 1

</llo_original>
